<compile_context>
chip_gen: v7x
topology: tpu7x:2x2x1
jax: 0.10.0
libtpu: 0.0.40
codegen_flags: <defaults>
</compile_context>

<pallas_src>
import math
import functools

import jax
import jax.numpy as jnp
from jax import lax
from jax.experimental import pallas as pl
from jax.experimental.pallas import tpu as pltpu


# -----------------------------------------------------------------------------
# Small helpers
# -----------------------------------------------------------------------------
def _nbytes(shape, dtype):
    n = 1
    for s in shape:
        n *= int(s)
    return n * jnp.dtype(dtype).itemsize


def _vmem_limit(block_bytes, *, headroom=8 << 20, floor=32 << 20, ceil=128 << 20):
    """Scoped-VMEM budget: 2x (double-buffered pipeline) + headroom, clamped."""
    return int(min(ceil, max(floor, 2 * block_bytes + headroom)))


# -----------------------------------------------------------------------------
# Kernel 1: fused Q/K/V projection   q,k,v = x{q,k,v} @ W{q,k,v}^T + b{q,k,v}
#   x*_ref : (tm, D) f32   w*t_ref : (D, tn) bf16   b*_ref : (1, tn) f32
#   outputs: (tm, tn) bf16 (f32 accumulation inside)
# -----------------------------------------------------------------------------
def _qkv_proj_kernel(xq_ref, xk_ref, xv_ref,
                     wqt_ref, wkt_ref, wvt_ref,
                     bq_ref, bk_ref, bv_ref,
                     q_ref, k_ref, v_ref):
    xq = xq_ref[...].astype(jnp.bfloat16)
    xk = xk_ref[...].astype(jnp.bfloat16)
    xv = xv_ref[...].astype(jnp.bfloat16)
    q_ref[...] = (jnp.dot(xq, wqt_ref[...], preferred_element_type=jnp.float32)
                  + bq_ref[...]).astype(q_ref.dtype)
    k_ref[...] = (jnp.dot(xk, wkt_ref[...], preferred_element_type=jnp.float32)
                  + bk_ref[...]).astype(k_ref.dtype)
    v_ref[...] = (jnp.dot(xv, wvt_ref[...], preferred_element_type=jnp.float32)
                  + bv_ref[...]).astype(v_ref.dtype)


def qkv_projection(xq, xk, xv, wqt, wkt, wvt, bq, bk, bv,
                   *, block_rows=256, block_cols=512):
    """xq/xk/xv: (N, D) f32; w*t: (D, D) bf16 (pre-transposed); b*: (D,) f32."""
    n, d_in = xq.shape
    d_out = wqt.shape[1]
    tm = min(block_rows, n)
    tn = min(block_cols, d_out)
    grid = (pl.cdiv(n, tm), pl.cdiv(d_out, tn))

    x_spec = pl.BlockSpec((tm, d_in), lambda i, j: (i, 0))
    w_spec = pl.BlockSpec((d_in, tn), lambda i, j: (0, j))   # resident across row tiles
    b_spec = pl.BlockSpec((1, tn), lambda i, j: (0, j))
    o_spec = pl.BlockSpec((tm, tn), lambda i, j: (i, j))
    out_shape = jax.ShapeDtypeStruct((n, d_out), jnp.bfloat16)

    block_bytes = (3 * _nbytes((tm, d_in), jnp.float32)
                   + 3 * _nbytes((d_in, tn), jnp.bfloat16)
                   + 3 * _nbytes((1, tn), jnp.float32)
                   + 3 * _nbytes((tm, tn), jnp.bfloat16))
    # TODO(synk): for very large d_model also tile d_in with an f32 accumulator.
    # TODO(synk): constant-index weight/bias blocks could be single-buffered via
    #             pipeline_mode=pl.Buffered(1) to halve their VMEM residency.

    return pl.pallas_call(
        _qkv_proj_kernel,
        grid=grid,
        in_specs=[x_spec, x_spec, x_spec,
                  w_spec, w_spec, w_spec,
                  b_spec, b_spec, b_spec],
        out_specs=(o_spec, o_spec, o_spec),
        out_shape=(out_shape, out_shape, out_shape),
        compiler_params=pltpu.CompilerParams(
            dimension_semantics=("parallel", "parallel"),
            vmem_limit_bytes=_vmem_limit(block_bytes)),
    )(xq, xk, xv, wqt, wkt, wvt,
      bq.reshape(1, d_out), bk.reshape(1, d_out), bv.reshape(1, d_out))


# -----------------------------------------------------------------------------
# Kernel 2a: attention WITH materialized weights + fused W_o epilogue.
#   One (batch, q-tile) per grid step; full-S K/V resident (needed to emit the
#   full softmax row).  q/k/v bf16, scale already folded into q.
# -----------------------------------------------------------------------------
def _attn_weights_kernel(q_ref, k_ref, v_ref, wot_ref, bo_ref,
                         o_ref, w_ref, ctx_ref, *, num_heads, d_head):
    q = q_ref[...]            # (tq, D) bf16
    k = k_ref[...]            # (S,  D) bf16
    v = v_ref[...]            # (S,  D) bf16

    for h in range(num_heads):                       # static unroll over heads
        sl = slice(h * d_head, (h + 1) * d_head)
        # Contract the d_head axes directly (q @ k^T without relayout of K).
        # TODO(synk): verify via pl.lower_as_mlir that no hidden vxpose of K is
        #             emitted on v6e/v7x; if so switch to pl.dot(trans_b=True).
        s = lax.dot_general(q[:, sl], k[:, sl],
                            dimension_numbers=(((1,), (1,)), ((), ())),
                            preferred_element_type=jnp.float32)      # (tq, S)
        m = jnp.max(s, axis=-1, keepdims=True)
        e = jnp.exp(s - m)
        w = e * pl.reciprocal(jnp.sum(e, axis=-1, keepdims=True), approx=True)
        w_ref[h] = w.astype(w_ref.dtype)
        # Direct per-head slice store into the bf16 context scratch: no big
        # live register set, no lane-shuffling concatenate.
        ctx_ref[:, sl] = jnp.dot(w.astype(jnp.bfloat16), v[:, sl],
                                 preferred_element_type=jnp.float32
                                 ).astype(jnp.bfloat16)

    # Fused output projection: one full-D-contraction MXU matmul; no HBM
    # round trip of the (B, S, D) context activation.
    o_ref[...] = (jnp.dot(ctx_ref[...], wot_ref[...],
                          preferred_element_type=jnp.float32)
                  + bo_ref[...]).astype(o_ref.dtype)


def attention_with_weights(q, k, v, wot, bo, num_heads, *,
                           weights_dtype=jnp.float32, q_block=128):
    """q,k,v: (B,S,D) bf16 -> (out (B,S,D) f32, weights (B,H,S,S))."""
    B, S, D = q.shape
    d_head = D // num_heads
    tq = min(q_block, S)          # tq=128 keeps the weights block inside v7x VMEM
    grid = (B, pl.cdiv(S, tq))

    kernel = functools.partial(_attn_weights_kernel,
                               num_heads=num_heads, d_head=d_head)

    q_spec = pl.BlockSpec((pl.Squeezed(), tq, D), lambda b, qi: (b, qi, 0))
    kv_spec = pl.BlockSpec((pl.Squeezed(), S, D), lambda b, qi: (b, 0, 0))
    wo_spec = pl.BlockSpec((D, D), lambda b, qi: (0, 0))
    bo_spec = pl.BlockSpec((1, D), lambda b, qi: (0, 0))
    o_spec = pl.BlockSpec((pl.Squeezed(), tq, D), lambda b, qi: (b, qi, 0))
    w_spec = pl.BlockSpec((pl.Squeezed(), num_heads, tq, S),
                          lambda b, qi: (b, 0, qi, 0))

    block_bytes = (_nbytes((tq, D), jnp.bfloat16)
                   + 2 * _nbytes((S, D), jnp.bfloat16)
                   + _nbytes((D, D), jnp.bfloat16)
                   + _nbytes((1, D), jnp.float32)
                   + _nbytes((tq, D), jnp.float32)
                   + _nbytes((num_heads, tq, S), weights_dtype)
                   + _nbytes((tq, D), jnp.bfloat16))

    return pl.pallas_call(
        kernel,
        grid=grid,
        in_specs=[q_spec, kv_spec, kv_spec, wo_spec, bo_spec],
        out_specs=(o_spec, w_spec),
        out_shape=(jax.ShapeDtypeStruct((B, S, D), jnp.float32),
                   jax.ShapeDtypeStruct((B, num_heads, S, S), weights_dtype)),
        scratch_shapes=[pltpu.VMEM((tq, D), jnp.bfloat16)],   # bf16 context tile
        compiler_params=pltpu.CompilerParams(
            dimension_semantics=("parallel", "parallel"),
            vmem_limit_bytes=_vmem_limit(block_bytes)),
    )(q, k, v, wot, bo.reshape(1, D))


# -----------------------------------------------------------------------------
# Kernel 2b: flash-style attention (no weights output) + fused W_o epilogue.
#   KV axis is a third "arbitrary" grid axis with an online-softmax state, so
#   K/V VMEM residency is O(tk) instead of O(S).
# -----------------------------------------------------------------------------
def _flash_attn_kernel(q_ref, k_ref, v_ref, wot_ref, bo_ref, o_ref,
                       m_ref, l_ref, acc_ref, ctx_ref, *, num_heads, d_head):
    kv = pl.program_id(2)

    @pl.when(kv == 0)
    def _init():
        m_ref[...] = jnp.full(m_ref.shape, -jnp.inf, m_ref.dtype)
        l_ref[...] = jnp.zeros(l_ref.shape, l_ref.dtype)
        acc_ref[...] = jnp.zeros(acc_ref.shape, acc_ref.dtype)

    q = q_ref[...]            # (tq, D) bf16, scale folded in
    k = k_ref[...]            # (tk, D) bf16
    v = v_ref[...]            # (tk, D) bf16

    for h in range(num_heads):                       # static unroll over heads
        sl = slice(h * d_head, (h + 1) * d_head)
        s = lax.dot_general(q[:, sl], k[:, sl],
                            dimension_numbers=(((1,), (1,)), ((), ())),
                            preferred_element_type=jnp.float32)     # (tq, tk)
        m_prev = m_ref[h]                                            # (tq, 1)
        m_new = jnp.maximum(m_prev, jnp.max(s, axis=-1, keepdims=True))
        alpha = jnp.exp(m_prev - m_new)
        p = jnp.exp(s - m_new)
        l_ref[h] = alpha * l_ref[h] + jnp.sum(p, axis=-1, keepdims=True)
        acc_ref[:, sl] = alpha * acc_ref[:, sl] + jnp.dot(
            p.astype(jnp.bfloat16), v[:, sl], preferred_element_type=jnp.float32)
        m_ref[h] = m_new

    @pl.when(kv == pl.num_programs(2) - 1)
    def _finalize():
        for h in range(num_heads):
            sl = slice(h * d_head, (h + 1) * d_head)
            inv = pl.reciprocal(l_ref[h], approx=True)
            ctx_ref[:, sl] = (acc_ref[:, sl] * inv).astype(jnp.bfloat16)
        o_ref[...] = (jnp.dot(ctx_ref[...], wot_ref[...],
                              preferred_element_type=jnp.float32)
                      + bo_ref[...]).astype(o_ref.dtype)


def flash_attention(q, k, v, wot, bo, num_heads, *, q_block=256, kv_block=512):
    """q,k,v: (B,S,D) bf16 -> out (B,S,D) f32 (no attention-weights writeback)."""
    B, S, D = q.shape
    d_head = D // num_heads
    tq = min(q_block, S)
    tk = min(kv_block, S)
    grid = (B, pl.cdiv(S, tq), pl.cdiv(S, tk))

    kernel = functools.partial(_flash_attn_kernel,
                               num_heads=num_heads, d_head=d_head)

    q_spec = pl.BlockSpec((pl.Squeezed(), tq, D), lambda b, qi, ki: (b, qi, 0))
    kv_spec = pl.BlockSpec((pl.Squeezed(), tk, D), lambda b, qi, ki: (b, ki, 0))
    wo_spec = pl.BlockSpec((D, D), lambda b, qi, ki: (0, 0))
    bo_spec = pl.BlockSpec((1, D), lambda b, qi, ki: (0, 0))
    o_spec = pl.BlockSpec((pl.Squeezed(), tq, D), lambda b, qi, ki: (b, qi, 0))

    block_bytes = (_nbytes((tq, D), jnp.bfloat16)
                   + 2 * _nbytes((tk, D), jnp.bfloat16)
                   + _nbytes((D, D), jnp.bfloat16)
                   + _nbytes((1, D), jnp.float32)
                   + _nbytes((tq, D), jnp.float32)            # output block
                   + _nbytes((tq, D), jnp.float32)            # acc scratch
                   + _nbytes((tq, D), jnp.bfloat16)           # ctx scratch
                   + 2 * _nbytes((num_heads, tq, 1), jnp.float32))

    return pl.pallas_call(
        kernel,
        grid=grid,
        in_specs=[q_spec, kv_spec, kv_spec, wo_spec, bo_spec],
        out_specs=o_spec,
        out_shape=jax.ShapeDtypeStruct((B, S, D), jnp.float32),
        scratch_shapes=[pltpu.VMEM((num_heads, tq, 1), jnp.float32),   # m
                        pltpu.VMEM((num_heads, tq, 1), jnp.float32),   # l
                        pltpu.VMEM((tq, D), jnp.float32),              # acc
                        pltpu.VMEM((tq, D), jnp.bfloat16)],            # ctx
        compiler_params=pltpu.CompilerParams(
            dimension_semantics=("parallel", "parallel", "arbitrary"),
            vmem_limit_bytes=_vmem_limit(block_bytes)),
    )(q, k, v, wot, bo.reshape(1, D))


# -----------------------------------------------------------------------------
# MultiHeadAttention forward (matches the PyTorch module semantics, mask=None)
# -----------------------------------------------------------------------------
def prepare_params(params, num_heads):
    """Pre-transpose torch-style (D_out, D_in) weights, cast to bf16 once, and
    fold the 1/sqrt(d_head) attention scale into W_q / b_q (free at runtime)."""
    d_model = params["W_q"].shape[0]
    scale = 1.0 / math.sqrt(d_model // num_heads)
    return {
        "WqT": (params["W_q"].T * scale).astype(jnp.bfloat16),
        "bq": params["b_q"] * scale,
        "WkT": params["W_k"].T.astype(jnp.bfloat16), "bk": params["b_k"],
        "WvT": params["W_v"].T.astype(jnp.bfloat16), "bv": params["b_v"],
        "WoT": params["W_o"].T.astype(jnp.bfloat16), "bo": params["b_o"],
    }


@functools.partial(jax.jit,
                   static_argnames=("num_heads", "return_weights", "weights_dtype"))
def multi_head_attention(prepared, Q, K, V, num_heads, *,
                         return_weights=True, weights_dtype=jnp.float32):
    # TODO(synk): optional `mask` argument of the reference module not wired in
    # (test path uses mask=None, matching torch semantics exactly).
    B, S, D = Q.shape
    assert D % num_heads == 0

    q2, k2, v2 = qkv_projection(
        Q.reshape(B * S, D), K.reshape(B * S, D), V.reshape(B * S, D),
        prepared["WqT"], prepared["WkT"], prepared["WvT"],
        prepared["bq"], prepared["bk"], prepared["bv"])

    q = q2.reshape(B, S, D)
    k = k2.reshape(B, S, D)
    v = v2.reshape(B, S, D)

    if return_weights:
        # Module semantics: also return softmax weights (f32 by default; pass
        # weights_dtype=jnp.bfloat16 to halve the O(B*H*S^2) writeback).
        return attention_with_weights(q, k, v, prepared["WoT"], prepared["bo"],
                                      num_heads, weights_dtype=weights_dtype)
    out = flash_attention(q, k, v, prepared["WoT"], prepared["bo"], num_heads)
    return out, None


# -----------------------------------------------------------------------------
# Pure-JAX f32 reference for verification
# -----------------------------------------------------------------------------
def mha_reference(params, Q, K, V, num_heads):
    B, S, D = Q.shape
    d_head = D // num_heads

    def lin(x, w, b):
        return x @ w.T + b

    def split(x):
        return jnp.transpose(x.reshape(B, S, num_heads, d_head), (0, 2, 1, 3))

    q = split(lin(Q, params["W_q"], params["b_q"]))
    k = split(lin(K, params["W_k"], params["b_k"]))
    v = split(lin(V, params["W_v"], params["b_v"]))
    scores = jnp.einsum("bhqd,bhkd->bhqk", q, k) / math.sqrt(d_head)
    w = jax.nn.softmax(scores, axis=-1)
    o = jnp.einsum("bhqk,bhkd->bhqd", w, v)
    o = jnp.transpose(o, (0, 2, 1, 3)).reshape(B, S, D)
    return lin(o, params["W_o"], params["b_o"]), w


if __name__ == "__main__":
    B, S, D, H = 2, 8, 32, 4  # batch, seq, d_model, num_heads

    key = jax.random.PRNGKey(0)
    keys = jax.random.split(key, 11)
    init = lambda k, shape: (jax.random.normal(k, shape, jnp.float32) * 0.1)

    params = {
        "W_q": init(keys[0], (D, D)), "b_q": init(keys[1], (D,)),
        "W_k": init(keys[2], (D, D)), "b_k": init(keys[3], (D,)),
        "W_v": init(keys[4], (D, D)), "b_v": init(keys[5], (D,)),
        "W_o": init(keys[6], (D, D)), "b_o": init(keys[7], (D,)),
    }
    prepared = prepare_params(params, H)

    Q = jax.random.normal(keys[8], (B, S, D), jnp.float32)
    K = jax.random.normal(keys[9], (B, S, D), jnp.float32)
    V = jax.random.normal(keys[10], (B, S, D), jnp.float32)

    ref_out, ref_w = mha_reference(params, Q, K, V, H)

    # Path 1: full module semantics (output + attention weights).
    out, attn_w = multi_head_attention(prepared, Q, K, V, H, return_weights=True)
    out = jax.block_until_ready(out)
    attn_w = jax.block_until_ready(attn_w)
    assert out.shape == (B, S, D)
    assert attn_w.shape == (B, H, S, S)
    # bf16 MXU operands (f32 accumulation) -> looser parity than pure f32.
    assert jnp.allclose(out, ref_out, atol=3e-2, rtol=3e-2)
    assert jnp.allclose(attn_w, ref_w, atol=3e-2, rtol=3e-2)

    # Path 2: flash-style (online softmax, KV-tiled, no S^2 weights writeback).
    out2, _ = multi_head_attention(prepared, Q, K, V, H, return_weights=False)
    out2 = jax.block_until_ready(out2)
    assert out2.shape == (B, S, D)
    assert jnp.allclose(out2, ref_out, atol=3e-2, rtol=3e-2)

    print("KERNEL_OK")
</pallas_src>

<mosaic_0001>
module attributes {stable_mosaic.version = 11 : i64} {
  func.func @_qkv_proj_kernel(%arg0: i32, %arg1: i32, %arg2: memref<16x32xf32, #tpu.memory_space<vmem>>, %arg3: memref<16x32xf32, #tpu.memory_space<vmem>>, %arg4: memref<16x32xf32, #tpu.memory_space<vmem>>, %arg5: memref<32x32xbf16, #tpu.memory_space<vmem>>, %arg6: memref<32x32xbf16, #tpu.memory_space<vmem>>, %arg7: memref<32x32xbf16, #tpu.memory_space<vmem>>, %arg8: memref<1x32xf32, #tpu.memory_space<vmem>>, %arg9: memref<1x32xf32, #tpu.memory_space<vmem>>, %arg10: memref<1x32xf32, #tpu.memory_space<vmem>>, %arg11: memref<16x32xbf16, #tpu.memory_space<vmem>>, %arg12: memref<16x32xbf16, #tpu.memory_space<vmem>>, %arg13: memref<16x32xbf16, #tpu.memory_space<vmem>>) attributes {dimension_semantics = [#tpu.dimension_semantics<parallel>, #tpu.dimension_semantics<parallel>], iteration_bounds = array<i64: 1, 1>, scalar_prefetch = 0 : i64, scratch_operands = 0 : i64, tpu.core_type = #tpu.core_type<tc>, window_params = [{transform_indices = @transform_0, window_bounds = array<i64: 16, 32>}, {transform_indices = @transform_1, window_bounds = array<i64: 16, 32>}, {transform_indices = @transform_2, window_bounds = array<i64: 16, 32>}, {transform_indices = @transform_3, window_bounds = array<i64: 32, 32>}, {transform_indices = @transform_4, window_bounds = array<i64: 32, 32>}, {transform_indices = @transform_5, window_bounds = array<i64: 32, 32>}, {transform_indices = @transform_6, window_bounds = array<i64: 1, 32>}, {transform_indices = @transform_7, window_bounds = array<i64: 1, 32>}, {transform_indices = @transform_8, window_bounds = array<i64: 1, 32>}, {transform_indices = @transform_9, window_bounds = array<i64: 16, 32>}, {transform_indices = @transform_10, window_bounds = array<i64: 16, 32>}, {transform_indices = @transform_11, window_bounds = array<i64: 16, 32>}]} {
    %c0 = arith.constant 0 : index
    %c0_0 = arith.constant 0 : index
    %0 = vector.load %arg2[%c0, %c0_0] : memref<16x32xf32, #tpu.memory_space<vmem>>, vector<16x32xf32>
    %1 = arith.truncf %0 : vector<16x32xf32> to vector<16x32xbf16>
    %c0_1 = arith.constant 0 : index
    %c0_2 = arith.constant 0 : index
    %2 = vector.load %arg3[%c0_1, %c0_2] : memref<16x32xf32, #tpu.memory_space<vmem>>, vector<16x32xf32>
    %3 = arith.truncf %2 : vector<16x32xf32> to vector<16x32xbf16>
    %c0_3 = arith.constant 0 : index
    %c0_4 = arith.constant 0 : index
    %4 = vector.load %arg4[%c0_3, %c0_4] : memref<16x32xf32, #tpu.memory_space<vmem>>, vector<16x32xf32>
    %5 = arith.truncf %4 : vector<16x32xf32> to vector<16x32xbf16>
    %c0_5 = arith.constant 0 : index
    %c0_6 = arith.constant 0 : index
    %6 = vector.load %arg5[%c0_5, %c0_6] : memref<32x32xbf16, #tpu.memory_space<vmem>>, vector<32x32xbf16>
    %cst = arith.constant dense<0.000000e+00> : vector<16x32xf32>
    %7 = tpu.matmul %1, %6, %cst {dimension_numbers = #tpu.dot_dimension_numbers<[1], [0], [0], [1], [0, 0, 1, 1], [], []>} : vector<16x32xbf16>, vector<32x32xbf16>, vector<16x32xf32> -> vector<16x32xf32>
    %c0_7 = arith.constant 0 : index
    %c0_8 = arith.constant 0 : index
    %8 = vector.load %arg8[%c0_7, %c0_8] : memref<1x32xf32, #tpu.memory_space<vmem>>, vector<1x32xf32>
    %9 = vector.broadcast %8 : vector<1x32xf32> to vector<16x32xf32>
    %10 = arith.addf %7, %9 : vector<16x32xf32>
    %11 = arith.truncf %10 : vector<16x32xf32> to vector<16x32xbf16>
    %c0_9 = arith.constant 0 : index
    %c0_10 = arith.constant 0 : index
    %12 = vector.load %arg11[%c0_9, %c0_10] : memref<16x32xbf16, #tpu.memory_space<vmem>>, vector<16x32xbf16>
    tpu.vector_store %arg11[%c0_9, %c0_10], %11 {strides = array<i32>} : memref<16x32xbf16, #tpu.memory_space<vmem>>, vector<16x32xbf16>,
    %c0_11 = arith.constant 0 : index
    %c0_12 = arith.constant 0 : index
    %13 = vector.load %arg6[%c0_11, %c0_12] : memref<32x32xbf16, #tpu.memory_space<vmem>>, vector<32x32xbf16>
    %cst_13 = arith.constant dense<0.000000e+00> : vector<16x32xf32>
    %14 = tpu.matmul %3, %13, %cst_13 {dimension_numbers = #tpu.dot_dimension_numbers<[1], [0], [0], [1], [0, 0, 1, 1], [], []>} : vector<16x32xbf16>, vector<32x32xbf16>, vector<16x32xf32> -> vector<16x32xf32>
    %c0_14 = arith.constant 0 : index
    %c0_15 = arith.constant 0 : index
    %15 = vector.load %arg9[%c0_14, %c0_15] : memref<1x32xf32, #tpu.memory_space<vmem>>, vector<1x32xf32>
    %16 = vector.broadcast %15 : vector<1x32xf32> to vector<16x32xf32>
    %17 = arith.addf %14, %16 : vector<16x32xf32>
    %18 = arith.truncf %17 : vector<16x32xf32> to vector<16x32xbf16>
    %c0_16 = arith.constant 0 : index
    %c0_17 = arith.constant 0 : index
    %19 = vector.load %arg12[%c0_16, %c0_17] : memref<16x32xbf16, #tpu.memory_space<vmem>>, vector<16x32xbf16>
    tpu.vector_store %arg12[%c0_16, %c0_17], %18 {strides = array<i32>} : memref<16x32xbf16, #tpu.memory_space<vmem>>, vector<16x32xbf16>,
    %c0_18 = arith.constant 0 : index
    %c0_19 = arith.constant 0 : index
    %20 = vector.load %arg7[%c0_18, %c0_19] : memref<32x32xbf16, #tpu.memory_space<vmem>>, vector<32x32xbf16>
    %cst_20 = arith.constant dense<0.000000e+00> : vector<16x32xf32>
    %21 = tpu.matmul %5, %20, %cst_20 {dimension_numbers = #tpu.dot_dimension_numbers<[1], [0], [0], [1], [0, 0, 1, 1], [], []>} : vector<16x32xbf16>, vector<32x32xbf16>, vector<16x32xf32> -> vector<16x32xf32>
    %c0_21 = arith.constant 0 : index
    %c0_22 = arith.constant 0 : index
    %22 = vector.load %arg10[%c0_21, %c0_22] : memref<1x32xf32, #tpu.memory_space<vmem>>, vector<1x32xf32>
    %23 = vector.broadcast %22 : vector<1x32xf32> to vector<16x32xf32>
    %24 = arith.addf %21, %23 : vector<16x32xf32>
    %25 = arith.truncf %24 : vector<16x32xf32> to vector<16x32xbf16>
    %c0_23 = arith.constant 0 : index
    %c0_24 = arith.constant 0 : index
    %26 = vector.load %arg13[%c0_23, %c0_24] : memref<16x32xbf16, #tpu.memory_space<vmem>>, vector<16x32xbf16>
    tpu.vector_store %arg13[%c0_23, %c0_24], %25 {strides = array<i32>} : memref<16x32xbf16, #tpu.memory_space<vmem>>, vector<16x32xbf16>,
    return
  }
  func.func @transform_0(%arg0: i32, %arg1: i32) -> (i32, i32) {
    %c0_i32 = arith.constant 0 : i32
    %c0_i32_0 = arith.constant 0 : i32
    return %arg0, %c0_i32 : i32, i32
  }
  func.func @transform_1(%arg0: i32, %arg1: i32) -> (i32, i32) {
    %c0_i32 = arith.constant 0 : i32
    %c0_i32_0 = arith.constant 0 : i32
    return %arg0, %c0_i32 : i32, i32
  }
  func.func @transform_2(%arg0: i32, %arg1: i32) -> (i32, i32) {
    %c0_i32 = arith.constant 0 : i32
    %c0_i32_0 = arith.constant 0 : i32
    return %arg0, %c0_i32 : i32, i32
  }
  func.func @transform_3(%arg0: i32, %arg1: i32) -> (i32, i32) {
    %c0_i32 = arith.constant 0 : i32
    %c0_i32_0 = arith.constant 0 : i32
    return %c0_i32, %arg1 : i32, i32
  }
  func.func @transform_4(%arg0: i32, %arg1: i32) -> (i32, i32) {
    %c0_i32 = arith.constant 0 : i32
    %c0_i32_0 = arith.constant 0 : i32
    return %c0_i32, %arg1 : i32, i32
  }
  func.func @transform_5(%arg0: i32, %arg1: i32) -> (i32, i32) {
    %c0_i32 = arith.constant 0 : i32
    %c0_i32_0 = arith.constant 0 : i32
    return %c0_i32, %arg1 : i32, i32
  }
  func.func @transform_6(%arg0: i32, %arg1: i32) -> (i32, i32) {
    %c0_i32 = arith.constant 0 : i32
    %c0_i32_0 = arith.constant 0 : i32
    return %c0_i32, %arg1 : i32, i32
  }
  func.func @transform_7(%arg0: i32, %arg1: i32) -> (i32, i32) {
    %c0_i32 = arith.constant 0 : i32
    %c0_i32_0 = arith.constant 0 : i32
    return %c0_i32, %arg1 : i32, i32
  }
  func.func @transform_8(%arg0: i32, %arg1: i32) -> (i32, i32) {
    %c0_i32 = arith.constant 0 : i32
    %c0_i32_0 = arith.constant 0 : i32
    return %c0_i32, %arg1 : i32, i32
  }
  func.func @transform_9(%arg0: i32, %arg1: i32) -> (i32, i32) {
    %c0_i32 = arith.constant 0 : i32
    return %arg0, %arg1 : i32, i32
  }
  func.func @transform_10(%arg0: i32, %arg1: i32) -> (i32, i32) {
    %c0_i32 = arith.constant 0 : i32
    return %arg0, %arg1 : i32, i32
  }
  func.func @transform_11(%arg0: i32, %arg1: i32) -> (i32, i32) {
    %c0_i32 = arith.constant 0 : i32
    return %arg0, %arg1 : i32, i32
  }
}

module attributes {stable_mosaic.version = 11 : i64} {
  func.func @_attn_weights_kernel(%arg0: i32, %arg1: i32, %arg2: memref<1x8x32xbf16, #tpu.memory_space<vmem>>, %arg3: memref<1x8x32xbf16, #tpu.memory_space<vmem>>, %arg4: memref<1x8x32xbf16, #tpu.memory_space<vmem>>, %arg5: memref<32x32xbf16, #tpu.memory_space<vmem>>, %arg6: memref<1x32xf32, #tpu.memory_space<vmem>>, %arg7: memref<1x8x32xf32, #tpu.memory_space<vmem>>, %arg8: memref<1x4x8x8xf32, #tpu.memory_space<vmem>>, %arg9: memref<8x32xbf16, #tpu.memory_space<vmem>>) attributes {dimension_semantics = [#tpu.dimension_semantics<parallel>, #tpu.dimension_semantics<parallel>], iteration_bounds = array<i64: 2, 1>, scalar_prefetch = 0 : i64, scratch_operands = 1 : i64, tpu.core_type = #tpu.core_type<tc>, window_params = [{transform_indices = @transform_0, window_bounds = array<i64: 1, 8, 32>}, {transform_indices = @transform_1, window_bounds = array<i64: 1, 8, 32>}, {transform_indices = @transform_2, window_bounds = array<i64: 1, 8, 32>}, {pipeline_mode = #tpu.pipeline_mode<synchronous>, transform_indices = @transform_3, window_bounds = array<i64: 32, 32>}, {pipeline_mode = #tpu.pipeline_mode<synchronous>, transform_indices = @transform_4, window_bounds = array<i64: 1, 32>}, {transform_indices = @transform_5, window_bounds = array<i64: 1, 8, 32>}, {transform_indices = @transform_6, window_bounds = array<i64: 1, 4, 8, 8>}]} {
    %c0 = arith.constant 0 : index
    %c0_0 = arith.constant 0 : index
    %c0_1 = arith.constant 0 : index
    %0 = vector.load %arg2[%c0, %c0_0, %c0_1] : memref<1x8x32xbf16, #tpu.memory_space<vmem>>, vector<1x8x32xbf16>
    %1 = vector.shape_cast %0 : vector<1x8x32xbf16> to vector<8x32xbf16>
    %c0_2 = arith.constant 0 : index
    %c0_3 = arith.constant 0 : index
    %c0_4 = arith.constant 0 : index
    %2 = vector.load %arg3[%c0_2, %c0_3, %c0_4] : memref<1x8x32xbf16, #tpu.memory_space<vmem>>, vector<1x8x32xbf16>
    %3 = vector.shape_cast %2 : vector<1x8x32xbf16> to vector<8x32xbf16>
    %c0_5 = arith.constant 0 : index
    %c0_6 = arith.constant 0 : index
    %c0_7 = arith.constant 0 : index
    %4 = vector.load %arg4[%c0_5, %c0_6, %c0_7] : memref<1x8x32xbf16, #tpu.memory_space<vmem>>, vector<1x8x32xbf16>
    %5 = vector.shape_cast %4 : vector<1x8x32xbf16> to vector<8x32xbf16>
    %6 = vector.extract_strided_slice %1 {offsets = [0, 0], sizes = [8, 8], strides = [1, 1]} : vector<8x32xbf16> to vector<8x8xbf16>
    %7 = vector.extract_strided_slice %3 {offsets = [0, 0], sizes = [8, 8], strides = [1, 1]} : vector<8x32xbf16> to vector<8x8xbf16>
    %cst = arith.constant dense<0.000000e+00> : vector<8x8xf32>
    %8 = tpu.matmul %6, %7, %cst {dimension_numbers = #tpu.dot_dimension_numbers<[1], [1], [0], [0], [0, 0, 1, 0], [], []>} : vector<8x8xbf16>, vector<8x8xbf16>, vector<8x8xf32> -> vector<8x8xf32>
    %cst_8 = arith.constant dense<0xFF800000> : vector<8xf32>
    %9 = vector.multi_reduction <maximumf>, %8, %cst_8 [1] : vector<8x8xf32> to vector<8xf32>
    %10 = vector.shape_cast %9 : vector<8xf32> to vector<8x1xf32>
    %11 = vector.broadcast %10 : vector<8x1xf32> to vector<8x8xf32>
    %12 = arith.subf %8, %11 : vector<8x8xf32>
    %13 = math.exp %12 : vector<8x8xf32>
    %cst_9 = arith.constant dense<0.000000e+00> : vector<8xf32>
    %14 = vector.multi_reduction <add>, %13, %cst_9 [1] : vector<8x8xf32> to vector<8xf32>
    %15 = vector.shape_cast %14 : vector<8xf32> to vector<8x1xf32>
    %16 = tpu.reciprocal %15 {approx = true} : vector<8x1xf32> -> vector<8x1xf32>
    %17 = vector.broadcast %16 : vector<8x1xf32> to vector<8x8xf32>
    %18 = arith.mulf %13, %17 : vector<8x8xf32>
    %c0_10 = arith.constant 0 : index
    %c0_11 = arith.constant 0 : index
    %c0_12 = arith.constant 0 : index
    %c0_13 = arith.constant 0 : index
    %19 = vector.load %arg8[%c0_10, %c0_11, %c0_12, %c0_13] : memref<1x4x8x8xf32, #tpu.memory_space<vmem>>, vector<1x1x8x8xf32>
    %20 = vector.shape_cast %19 : vector<1x1x8x8xf32> to vector<8x8xf32>
    %21 = vector.shape_cast %18 : vector<8x8xf32> to vector<1x1x8x8xf32>
    tpu.vector_store %arg8[%c0_10, %c0_11, %c0_12, %c0_13], %21 {strides = array<i32>} : memref<1x4x8x8xf32, #tpu.memory_space<vmem>>, vector<1x1x8x8xf32>,
    %22 = arith.truncf %18 : vector<8x8xf32> to vector<8x8xbf16>
    %23 = vector.extract_strided_slice %5 {offsets = [0, 0], sizes = [8, 8], strides = [1, 1]} : vector<8x32xbf16> to vector<8x8xbf16>
    %cst_14 = arith.constant dense<0.000000e+00> : vector<8x8xf32>
    %24 = tpu.matmul %22, %23, %cst_14 {dimension_numbers = #tpu.dot_dimension_numbers<[1], [0], [0], [1], [0, 0, 1, 1], [], []>} : vector<8x8xbf16>, vector<8x8xbf16>, vector<8x8xf32> -> vector<8x8xf32>
    %25 = arith.truncf %24 : vector<8x8xf32> to vector<8x8xbf16>
    %c0_15 = arith.constant 0 : index
    %c0_16 = arith.constant 0 : index
    %26 = vector.load %arg9[%c0_15, %c0_16] : memref<8x32xbf16, #tpu.memory_space<vmem>>, vector<8x8xbf16>
    tpu.vector_store %arg9[%c0_15, %c0_16], %25 {strides = array<i32>} : memref<8x32xbf16, #tpu.memory_space<vmem>>, vector<8x8xbf16>,
    %27 = vector.extract_strided_slice %1 {offsets = [0, 8], sizes = [8, 8], strides = [1, 1]} : vector<8x32xbf16> to vector<8x8xbf16>
    %28 = vector.extract_strided_slice %3 {offsets = [0, 8], sizes = [8, 8], strides = [1, 1]} : vector<8x32xbf16> to vector<8x8xbf16>
    %cst_17 = arith.constant dense<0.000000e+00> : vector<8x8xf32>
    %29 = tpu.matmul %27, %28, %cst_17 {dimension_numbers = #tpu.dot_dimension_numbers<[1], [1], [0], [0], [0, 0, 1, 0], [], []>} : vector<8x8xbf16>, vector<8x8xbf16>, vector<8x8xf32> -> vector<8x8xf32>
    %cst_18 = arith.constant dense<0xFF800000> : vector<8xf32>
    %30 = vector.multi_reduction <maximumf>, %29, %cst_18 [1] : vector<8x8xf32> to vector<8xf32>
    %31 = vector.shape_cast %30 : vector<8xf32> to vector<8x1xf32>
    %32 = vector.broadcast %31 : vector<8x1xf32> to vector<8x8xf32>
    %33 = arith.subf %29, %32 : vector<8x8xf32>
    %34 = math.exp %33 : vector<8x8xf32>
    %cst_19 = arith.constant dense<0.000000e+00> : vector<8xf32>
    %35 = vector.multi_reduction <add>, %34, %cst_19 [1] : vector<8x8xf32> to vector<8xf32>
    %36 = vector.shape_cast %35 : vector<8xf32> to vector<8x1xf32>
    %37 = tpu.reciprocal %36 {approx = true} : vector<8x1xf32> -> vector<8x1xf32>
    %38 = vector.broadcast %37 : vector<8x1xf32> to vector<8x8xf32>
    %39 = arith.mulf %34, %38 : vector<8x8xf32>
    %c0_20 = arith.constant 0 : index
    %c1 = arith.constant 1 : index
    %c0_21 = arith.constant 0 : index
    %c0_22 = arith.constant 0 : index
    %40 = vector.load %arg8[%c0_20, %c1, %c0_21, %c0_22] : memref<1x4x8x8xf32, #tpu.memory_space<vmem>>, vector<1x1x8x8xf32>
    %41 = vector.shape_cast %40 : vector<1x1x8x8xf32> to vector<8x8xf32>
    %42 = vector.shape_cast %39 : vector<8x8xf32> to vector<1x1x8x8xf32>
    tpu.vector_store %arg8[%c0_20, %c1, %c0_21, %c0_22], %42 {strides = array<i32>} : memref<1x4x8x8xf32, #tpu.memory_space<vmem>>, vector<1x1x8x8xf32>,
    %43 = arith.truncf %39 : vector<8x8xf32> to vector<8x8xbf16>
    %44 = vector.extract_strided_slice %5 {offsets = [0, 8], sizes = [8, 8], strides = [1, 1]} : vector<8x32xbf16> to vector<8x8xbf16>
    %cst_23 = arith.constant dense<0.000000e+00> : vector<8x8xf32>
    %45 = tpu.matmul %43, %44, %cst_23 {dimension_numbers = #tpu.dot_dimension_numbers<[1], [0], [0], [1], [0, 0, 1, 1], [], []>} : vector<8x8xbf16>, vector<8x8xbf16>, vector<8x8xf32> -> vector<8x8xf32>
    %46 = arith.truncf %45 : vector<8x8xf32> to vector<8x8xbf16>
    %c0_24 = arith.constant 0 : index
    %c8 = arith.constant 8 : index
    %47 = vector.load %arg9[%c0_24, %c8] : memref<8x32xbf16, #tpu.memory_space<vmem>>, vector<8x8xbf16>
    tpu.vector_store %arg9[%c0_24, %c8], %46 {strides = array<i32>} : memref<8x32xbf16, #tpu.memory_space<vmem>>, vector<8x8xbf16>,
    %48 = vector.extract_strided_slice %1 {offsets = [0, 16], sizes = [8, 8], strides = [1, 1]} : vector<8x32xbf16> to vector<8x8xbf16>
    %49 = vector.extract_strided_slice %3 {offsets = [0, 16], sizes = [8, 8], strides = [1, 1]} : vector<8x32xbf16> to vector<8x8xbf16>
    %cst_25 = arith.constant dense<0.000000e+00> : vector<8x8xf32>
    %50 = tpu.matmul %48, %49, %cst_25 {dimension_numbers = #tpu.dot_dimension_numbers<[1], [1], [0], [0], [0, 0, 1, 0], [], []>} : vector<8x8xbf16>, vector<8x8xbf16>, vector<8x8xf32> -> vector<8x8xf32>
    %cst_26 = arith.constant dense<0xFF800000> : vector<8xf32>
    %51 = vector.multi_reduction <maximumf>, %50, %cst_26 [1] : vector<8x8xf32> to vector<8xf32>
    %52 = vector.shape_cast %51 : vector<8xf32> to vector<8x1xf32>
    %53 = vector.broadcast %52 : vector<8x1xf32> to vector<8x8xf32>
    %54 = arith.subf %50, %53 : vector<8x8xf32>
    %55 = math.exp %54 : vector<8x8xf32>
    %cst_27 = arith.constant dense<0.000000e+00> : vector<8xf32>
    %56 = vector.multi_reduction <add>, %55, %cst_27 [1] : vector<8x8xf32> to vector<8xf32>
    %57 = vector.shape_cast %56 : vector<8xf32> to vector<8x1xf32>
    %58 = tpu.reciprocal %57 {approx = true} : vector<8x1xf32> -> vector<8x1xf32>
    %59 = vector.broadcast %58 : vector<8x1xf32> to vector<8x8xf32>
    %60 = arith.mulf %55, %59 : vector<8x8xf32>
    %c0_28 = arith.constant 0 : index
    %c2 = arith.constant 2 : index
    %c0_29 = arith.constant 0 : index
    %c0_30 = arith.constant 0 : index
    %61 = vector.load %arg8[%c0_28, %c2, %c0_29, %c0_30] : memref<1x4x8x8xf32, #tpu.memory_space<vmem>>, vector<1x1x8x8xf32>
    %62 = vector.shape_cast %61 : vector<1x1x8x8xf32> to vector<8x8xf32>
    %63 = vector.shape_cast %60 : vector<8x8xf32> to vector<1x1x8x8xf32>
    tpu.vector_store %arg8[%c0_28, %c2, %c0_29, %c0_30], %63 {strides = array<i32>} : memref<1x4x8x8xf32, #tpu.memory_space<vmem>>, vector<1x1x8x8xf32>,
    %64 = arith.truncf %60 : vector<8x8xf32> to vector<8x8xbf16>
    %65 = vector.extract_strided_slice %5 {offsets = [0, 16], sizes = [8, 8], strides = [1, 1]} : vector<8x32xbf16> to vector<8x8xbf16>
    %cst_31 = arith.constant dense<0.000000e+00> : vector<8x8xf32>
    %66 = tpu.matmul %64, %65, %cst_31 {dimension_numbers = #tpu.dot_dimension_numbers<[1], [0], [0], [1], [0, 0, 1, 1], [], []>} : vector<8x8xbf16>, vector<8x8xbf16>, vector<8x8xf32> -> vector<8x8xf32>
    %67 = arith.truncf %66 : vector<8x8xf32> to vector<8x8xbf16>
    %c0_32 = arith.constant 0 : index
    %c16 = arith.constant 16 : index
    %68 = vector.load %arg9[%c0_32, %c16] : memref<8x32xbf16, #tpu.memory_space<vmem>>, vector<8x8xbf16>
    tpu.vector_store %arg9[%c0_32, %c16], %67 {strides = array<i32>} : memref<8x32xbf16, #tpu.memory_space<vmem>>, vector<8x8xbf16>,
    %69 = vector.extract_strided_slice %1 {offsets = [0, 24], sizes = [8, 8], strides = [1, 1]} : vector<8x32xbf16> to vector<8x8xbf16>
    %70 = vector.extract_strided_slice %3 {offsets = [0, 24], sizes = [8, 8], strides = [1, 1]} : vector<8x32xbf16> to vector<8x8xbf16>
    %cst_33 = arith.constant dense<0.000000e+00> : vector<8x8xf32>
    %71 = tpu.matmul %69, %70, %cst_33 {dimension_numbers = #tpu.dot_dimension_numbers<[1], [1], [0], [0], [0, 0, 1, 0], [], []>} : vector<8x8xbf16>, vector<8x8xbf16>, vector<8x8xf32> -> vector<8x8xf32>
    %cst_34 = arith.constant dense<0xFF800000> : vector<8xf32>
    %72 = vector.multi_reduction <maximumf>, %71, %cst_34 [1] : vector<8x8xf32> to vector<8xf32>
    %73 = vector.shape_cast %72 : vector<8xf32> to vector<8x1xf32>
    %74 = vector.broadcast %73 : vector<8x1xf32> to vector<8x8xf32>
    %75 = arith.subf %71, %74 : vector<8x8xf32>
    %76 = math.exp %75 : vector<8x8xf32>
    %cst_35 = arith.constant dense<0.000000e+00> : vector<8xf32>
    %77 = vector.multi_reduction <add>, %76, %cst_35 [1] : vector<8x8xf32> to vector<8xf32>
    %78 = vector.shape_cast %77 : vector<8xf32> to vector<8x1xf32>
    %79 = tpu.reciprocal %78 {approx = true} : vector<8x1xf32> -> vector<8x1xf32>
    %80 = vector.broadcast %79 : vector<8x1xf32> to vector<8x8xf32>
    %81 = arith.mulf %76, %80 : vector<8x8xf32>
    %c0_36 = arith.constant 0 : index
    %c3 = arith.constant 3 : index
    %c0_37 = arith.constant 0 : index
    %c0_38 = arith.constant 0 : index
    %82 = vector.load %arg8[%c0_36, %c3, %c0_37, %c0_38] : memref<1x4x8x8xf32, #tpu.memory_space<vmem>>, vector<1x1x8x8xf32>
    %83 = vector.shape_cast %82 : vector<1x1x8x8xf32> to vector<8x8xf32>
    %84 = vector.shape_cast %81 : vector<8x8xf32> to vector<1x1x8x8xf32>
    tpu.vector_store %arg8[%c0_36, %c3, %c0_37, %c0_38], %84 {strides = array<i32>} : memref<1x4x8x8xf32, #tpu.memory_space<vmem>>, vector<1x1x8x8xf32>,
    %85 = arith.truncf %81 : vector<8x8xf32> to vector<8x8xbf16>
    %86 = vector.extract_strided_slice %5 {offsets = [0, 24], sizes = [8, 8], strides = [1, 1]} : vector<8x32xbf16> to vector<8x8xbf16>
    %cst_39 = arith.constant dense<0.000000e+00> : vector<8x8xf32>
    %87 = tpu.matmul %85, %86, %cst_39 {dimension_numbers = #tpu.dot_dimension_numbers<[1], [0], [0], [1], [0, 0, 1, 1], [], []>} : vector<8x8xbf16>, vector<8x8xbf16>, vector<8x8xf32> -> vector<8x8xf32>
    %88 = arith.truncf %87 : vector<8x8xf32> to vector<8x8xbf16>
    %c0_40 = arith.constant 0 : index
    %c24 = arith.constant 24 : index
    %89 = vector.load %arg9[%c0_40, %c24] : memref<8x32xbf16, #tpu.memory_space<vmem>>, vector<8x8xbf16>
    tpu.vector_store %arg9[%c0_40, %c24], %88 {strides = array<i32>} : memref<8x32xbf16, #tpu.memory_space<vmem>>, vector<8x8xbf16>,
    %c0_41 = arith.constant 0 : index
    %c0_42 = arith.constant 0 : index
    %90 = vector.load %arg9[%c0_41, %c0_42] : memref<8x32xbf16, #tpu.memory_space<vmem>>, vector<8x32xbf16>
    %c0_43 = arith.constant 0 : index
    %c0_44 = arith.constant 0 : index
    %91 = vector.load %arg5[%c0_43, %c0_44] : memref<32x32xbf16, #tpu.memory_space<vmem>>, vector<32x32xbf16>
    %cst_45 = arith.constant dense<0.000000e+00> : vector<8x32xf32>
    %92 = tpu.matmul %90, %91, %cst_45 {dimension_numbers = #tpu.dot_dimension_numbers<[1], [0], [0], [1], [0, 0, 1, 1], [], []>} : vector<8x32xbf16>, vector<32x32xbf16>, vector<8x32xf32> -> vector<8x32xf32>
    %c0_46 = arith.constant 0 : index
    %c0_47 = arith.constant 0 : index
    %93 = vector.load %arg6[%c0_46, %c0_47] : memref<1x32xf32, #tpu.memory_space<vmem>>, vector<1x32xf32>
    %94 = vector.broadcast %93 : vector<1x32xf32> to vector<8x32xf32>
    %95 = arith.addf %92, %94 : vector<8x32xf32>
    %c0_48 = arith.constant 0 : index
    %c0_49 = arith.constant 0 : index
    %c0_50 = arith.constant 0 : index
    %96 = vector.load %arg7[%c0_48, %c0_49, %c0_50] : memref<1x8x32xf32, #tpu.memory_space<vmem>>, vector<1x8x32xf32>
    %97 = vector.shape_cast %96 : vector<1x8x32xf32> to vector<8x32xf32>
    %98 = vector.shape_cast %95 : vector<8x32xf32> to vector<1x8x32xf32>
    tpu.vector_store %arg7[%c0_48, %c0_49, %c0_50], %98 {strides = array<i32>} : memref<1x8x32xf32, #tpu.memory_space<vmem>>, vector<1x8x32xf32>,
    return
  }
  func.func @transform_0(%arg0: i32, %arg1: i32) -> (i32, i32, i32) {
    %c0_i32 = arith.constant 0 : i32
    %c0_i32_0 = arith.constant 0 : i32
    return %arg0, %arg1, %c0_i32 : i32, i32, i32
  }
  func.func @transform_1(%arg0: i32, %arg1: i32) -> (i32, i32, i32) {
    %c0_i32 = arith.constant 0 : i32
    %c0_i32_0 = arith.constant 0 : i32
    %c0_i32_1 = arith.constant 0 : i32
    return %arg0, %c0_i32, %c0_i32_0 : i32, i32, i32
  }
  func.func @transform_2(%arg0: i32, %arg1: i32) -> (i32, i32, i32) {
    %c0_i32 = arith.constant 0 : i32
    %c0_i32_0 = arith.constant 0 : i32
    %c0_i32_1 = arith.constant 0 : i32
    return %arg0, %c0_i32, %c0_i32_0 : i32, i32, i32
  }
  func.func @transform_3(%arg0: i32, %arg1: i32) -> (i32, i32) {
    %c0_i32 = arith.constant 0 : i32
    %c0_i32_0 = arith.constant 0 : i32
    %c0_i32_1 = arith.constant 0 : i32
    return %c0_i32, %c0_i32_0 : i32, i32
  }
  func.func @transform_4(%arg0: i32, %arg1: i32) -> (i32, i32) {
    %c0_i32 = arith.constant 0 : i32
    %c0_i32_0 = arith.constant 0 : i32
    %c0_i32_1 = arith.constant 0 : i32
    return %c0_i32, %c0_i32_0 : i32, i32
  }
  func.func @transform_5(%arg0: i32, %arg1: i32) -> (i32, i32, i32) {
    %c0_i32 = arith.constant 0 : i32
    %c0_i32_0 = arith.constant 0 : i32
    return %arg0, %arg1, %c0_i32 : i32, i32, i32
  }
  func.func @transform_6(%arg0: i32, %arg1: i32) -> (i32, i32, i32, i32) {
    %c0_i32 = arith.constant 0 : i32
    %c0_i32_0 = arith.constant 0 : i32
    %c0_i32_1 = arith.constant 0 : i32
    return %arg0, %c0_i32, %arg1, %c0_i32_0 : i32, i32, i32, i32
  }
}

</mosaic_0001>

<llo_original>
// kernel: multi_head_attention.2
$region0: #{multi_head_attention.2}
  #allocation0 [shape = 'u32[]', space=smem, size = 0x4, offset = 0x4, fixed_abs, tag = 'smem constant byte address 0x4 - core index']
  #allocation1 [shape = 'u32[144,128]{1,0:T(1,128)}', space=vmem, size = 0x12000, scoped, tag = 'internal scratch']
  %s0 = inlined_call_operand.vmem [shape: f32[16,32], index: 0, kind: input, shape index: {}]
  %s1 = inlined_call_operand.vmem [shape: f32[16,32], index: 1, kind: input, shape index: {}]
  %s2 = inlined_call_operand.vmem [shape: f32[16,32], index: 2, kind: input, shape index: {}]
  %s3 = inlined_call_operand.hbm [shape: bf16[32,32], index: 3, kind: input, shape index: {}]
  %s4 = inlined_call_operand.hbm [shape: bf16[32,32], index: 4, kind: input, shape index: {}]
  %s5 = inlined_call_operand.hbm [shape: bf16[32,32], index: 5, kind: input, shape index: {}]
  %s6 = inlined_call_operand.vmem [shape: f32[1,32], index: 6, kind: input, shape index: {}]
  %s7 = inlined_call_operand.hbm [shape: f32[1,32], index: 7, kind: input, shape index: {}]
  %s8 = inlined_call_operand.vmem [shape: f32[1,32], index: 8, kind: input, shape index: {}]
  %s9 = inlined_call_operand.vmem [shape: bf16[16,32], index: 9, kind: output, shape index: {0}]
  %s10 = inlined_call_operand.vmem [shape: bf16[16,32], index: 10, kind: output, shape index: {1}]
  %s11 = inlined_call_operand.vmem [shape: bf16[16,32], index: 11, kind: output, shape index: {2}]
  %12 = xla_tuple %s9, %s10, %s11
  %s13 = sld [smem:[#allocation0]]
  $region78: #{multi_head_attention.2} parent=0
    _
  %s15 = ssub.s32 1, %s13
  %s16 = scalar_select 0, %s15, %s13
  $region1: #{multi_head_attention.2} parent=0
    #allocation2 [shape = 'u8[8192]{0}', space=vmem, size = 0x2000, scoped, tag = 'input window, operand 3, single buffered']
    #allocation3 [shape = 's32[1]{0}', space=sflag, size = 0x4, scoped, tag = 'scoped memory for multi_head_attention.2']
    #allocation4 [shape = 'u8[8192]{0}', space=vmem, size = 0x2000, scoped, tag = 'input window, operand 4, single buffered']
    #allocation5 [shape = 's32[1]{0}', space=sflag, size = 0x4, scoped, tag = 'scoped memory for multi_head_attention.2']
    #allocation6 [shape = 'u8[8192]{0}', space=vmem, size = 0x2000, scoped, tag = 'input window, operand 5, single buffered']
    #allocation7 [shape = 'u8[512]{0}', space=vmem, size = 0x400, scoped, tag = 'input window, operand 7, single buffered']
    #allocation8 [shape = 's32[1]{0}', space=sflag, size = 0x4, scoped, tag = 'scoped memory for multi_head_attention.2']
    %17 = vsyncpa [#allocation3], 0
    %18 = vsyncpa [#allocation5], 0
    %19 = vsyncpa [#allocation8], 0
    // Predicated region
    $region2: #{multi_head_attention.2} parent=1 // pred_check
      _
    $region3: #{multi_head_attention.2} parent=1 // pred_check_branch
      %21 = sbr.rel (0) target = $region5
    $region4: #{multi_head_attention.2} parent=1 // pred_region
      _
    $region5: #{multi_head_attention.2} parent=1 // pred_fallthru
      _
    // Predicated region
    $region6: #{multi_head_attention.2} parent=1 // pred_check
      _
    $region7: #{multi_head_attention.2} parent=1 // pred_check_branch
      %23 = sbr.rel (0) target = $region9
    $region8: #{multi_head_attention.2} parent=1 // pred_region
      _
    $region9: #{multi_head_attention.2} parent=1 // pred_fallthru
      _
    // Predicated region
    $region10: #{multi_head_attention.2} parent=1 // pred_check
      _
    $region11: #{multi_head_attention.2} parent=1 // pred_check_branch
      %25 = sbr.rel (0) target = $region13
    $region12: #{multi_head_attention.2} parent=1 // pred_region
      _
    $region13: #{multi_head_attention.2} parent=1 // pred_fallthru
      _
    // Predicated region
    $region14: #{multi_head_attention.2} parent=1 // pred_check
      _
    $region15: #{multi_head_attention.2} parent=1 // pred_check_branch
      %27 = sbr.rel (0) target = $region17
    $region16: #{multi_head_attention.2} parent=1 // pred_region
      %s29 = ssub.s32 256, 256
      %30 = vsyncadd [#allocation3], %s29
      %s31 = sshll.u32 [#allocation2], 4
      %s32 = int_to_ptr.vmem [resolvable:$true] %s31
      %37 = dma.hbm_to_vmem [thread:$0]  %s3, 256, %s32, [#allocation3], 64, 64, 4
    $region17: #{multi_head_attention.2} parent=1 // pred_fallthru
      _
    // Predicated region
    $region18: #{multi_head_attention.2} parent=1 // pred_check
      _
    $region19: #{multi_head_attention.2} parent=1 // pred_check_branch
      %39 = sbr.rel (0) target = $region21
    $region20: #{multi_head_attention.2} parent=1 // pred_region
      %s41 = ssub.s32 256, 256
      %42 = vsyncadd [#allocation5], %s41
      %s43 = sshll.u32 [#allocation4], 4
      %s44 = int_to_ptr.vmem [resolvable:$true] %s43
      %49 = dma.hbm_to_vmem [thread:$0]  %s4, 256, %s44, [#allocation5], 64, 64, 4
    $region21: #{multi_head_attention.2} parent=1 // pred_fallthru
      _
    // Predicated region
    $region22: #{multi_head_attention.2} parent=1 // pred_check
      _
    $region23: #{multi_head_attention.2} parent=1 // pred_check_branch
      %51 = sbr.rel (0) target = $region25
    $region24: #{multi_head_attention.2} parent=1 // pred_region
      %s53 = ssub.s32 256, 256
      %54 = vsyncadd [#allocation5], %s53
      %s55 = sshll.u32 [#allocation6], 4
      %s56 = int_to_ptr.vmem [resolvable:$true] %s55
      %61 = dma.hbm_to_vmem [thread:$0]  %s5, 256, %s56, [#allocation5], 64, 64, 4
    $region25: #{multi_head_attention.2} parent=1 // pred_fallthru
      _
    // Predicated region
    $region26: #{multi_head_attention.2} parent=1 // pred_check
      _
    $region27: #{multi_head_attention.2} parent=1 // pred_check_branch
      %63 = sbr.rel (0) target = $region29
    $region28: #{multi_head_attention.2} parent=1 // pred_region
      _
    $region29: #{multi_head_attention.2} parent=1 // pred_fallthru
      _
    // Predicated region
    $region30: #{multi_head_attention.2} parent=1 // pred_check
      _
    $region31: #{multi_head_attention.2} parent=1 // pred_check_branch
      %65 = sbr.rel (0) target = $region33
    $region32: #{multi_head_attention.2} parent=1 // pred_region
      %s67 = ssub.s32 16, 16
      %68 = vsyncadd [#allocation8], %s67
      %s70 = sshll.u32 [#allocation7], 4
      %s71 = int_to_ptr.vmem [resolvable:$true] %s70
      %73 = dma.hbm_to_vmem [thread:$0]  %s7, 16, %s71, [#allocation8]
    $region33: #{multi_head_attention.2} parent=1 // pred_fallthru
      _
    // Predicated region
    $region34: #{multi_head_attention.2} parent=1 // pred_check
      _
    $region35: #{multi_head_attention.2} parent=1 // pred_check_branch
      %75 = sbr.rel (0) target = $region37
    $region36: #{multi_head_attention.2} parent=1 // pred_region
      _
    $region37: #{multi_head_attention.2} parent=1 // pred_fallthru
      _
    // Predicated region
    $region38: #{multi_head_attention.2} parent=1 // pred_check
      _
    $region39: #{multi_head_attention.2} parent=1 // pred_check_branch
      %77 = sbr.rel (0) target = $region41
    $region40: #{multi_head_attention.2} parent=1 // pred_region
      %78 = dma.done [#allocation3], 256
    $region41: #{multi_head_attention.2} parent=1 // pred_fallthru
      _
    // Predicated region
    $region42: #{multi_head_attention.2} parent=1 // pred_check
      _
    $region43: #{multi_head_attention.2} parent=1 // pred_check_branch
      %80 = sbr.rel (0) target = $region45
    $region44: #{multi_head_attention.2} parent=1 // pred_region
      %81 = dma.done [#allocation5], 256
    $region45: #{multi_head_attention.2} parent=1 // pred_fallthru
      _
    // Predicated region
    $region46: #{multi_head_attention.2} parent=1 // pred_check
      _
    $region47: #{multi_head_attention.2} parent=1 // pred_check_branch
      %83 = sbr.rel (0) target = $region49
    $region48: #{multi_head_attention.2} parent=1 // pred_region
      %84 = dma.done [#allocation5], 256
    $region49: #{multi_head_attention.2} parent=1 // pred_fallthru
      _
    // Predicated region
    $region50: #{multi_head_attention.2} parent=1 // pred_check
      _
    $region51: #{multi_head_attention.2} parent=1 // pred_check_branch
      %86 = sbr.rel (0) target = $region53
    $region52: #{multi_head_attention.2} parent=1 // pred_region
      %87 = dma.done [#allocation8], 16
    $region53: #{multi_head_attention.2} parent=1 // pred_fallthru
      _
    %v89 = vld [vmem:[%s0] sm:$0xff]
    %v90 = vld [vmem:[%s0 + $0x8] sm:$0xff]
    %v91 = vpack.c.bf16 %v90, %v89
    %v92 = vld [vmem:[%s1] sm:$0xff]
    %v93 = vld [vmem:[%s1 + $0x8] sm:$0xff]
    %v94 = vpack.c.bf16 %v93, %v92
    %v95 = vld [vmem:[%s2] sm:$0xff]
    %v96 = vld [vmem:[%s2 + $0x8] sm:$0xff]
    %v97 = vpack.c.bf16 %v96, %v95
    %v98 = vld [vmem:[#allocation2] sm:$0xf]
    %v99 = vld [vmem:[#allocation2 + $0x4] sm:$0xf]
    %v100 = vld [vmem:[#allocation2 + $0x8] sm:$0xf]
    %v101 = vld [vmem:[#allocation2 + $0xc] sm:$0xf]
    %v102 = vld [vmem:[%s6] sm:$0x1]
    %v104 = vlaneseq
    %v105 = vshrl.u32 %v104, 7
    %v106 = vsub.s32 0, %v105
    %v107 = vrot.slane %v102, %v106
    %v113 = vunpack.c.l.b16 %v98
    %v114 = vunpack.c.l.b16 %v99
    %v115 = vunpack.c.l.b16 %v100
    %v116 = vunpack.c.l.b16 %v101
    %v117 = vpack.c.b16 %v114, %v113
    %v118 = vpack.c.b16 %v116, %v115
    %vm121 = vcmask 261120
    %v123 = vsel %vm121, %v91, 0
    %125 = vmatprep.subr.bf16.mxu0 0
    %126 = vmatpush1.bf16.msra.mxu0 %v117
    %127 = vmatprep.subr.bf16.mxu0 0
    %128 = vmatpush1.bf16.msra.mxu0 %v118
    %129 = vmatprep.subr.bf16.mxu0 0
    %130 = vmatpush1.bf16.msra.mxu0 0
    %131 = vmatprep.subr.bf16.mxu0 0
    %132 = vmatpush1.bf16.msra.mxu0 0
    %133 = vmatprep.subr.bf16.mxu0 0
    %134 = vmatpush1.bf16.msra.mxu0 0
    %135 = vmatprep.subr.bf16.mxu0 0
    %136 = vmatpush1.bf16.msra.mxu0 0
    %137 = vmatprep.subr.bf16.mxu0 0
    %138 = vmatpush1.bf16.msra.mxu0 0
    %139 = vmatprep.subr.bf16.mxu0 0
    %140 = vmatpush1.bf16.msra.mxu0 0
    %141 = vmatprep.subr.bf16.mxu0 0
    %142 = vmatpush1.bf16.msra.mxu0 0
    %143 = vmatprep.subr.bf16.mxu0 0
    %144 = vmatpush1.bf16.msra.mxu0 0
    %145 = vmatprep.subr.bf16.mxu0 0
    %146 = vmatpush1.bf16.msra.mxu0 0
    %147 = vmatprep.subr.bf16.mxu0 0
    %148 = vmatpush1.bf16.msra.mxu0 0
    %149 = vmatprep.subr.bf16.mxu0 0
    %150 = vmatpush1.bf16.msra.mxu0 0
    %151 = vmatprep.subr.bf16.mxu0 0
    %152 = vmatpush1.bf16.msra.mxu0 0
    %153 = vmatprep.subr.bf16.mxu0 0
    %154 = vmatpush1.bf16.msra.mxu0 0
    %155 = vmatprep.subr.bf16.mxu0 0
    %156 = vmatpush1.bf16.msra.mxu0 0
    %157 = vmatprep.mubr.bf16.mxu0 0
    %158 = vmatmul.mubr.bf16.gmra.mrb[0].mxu0 %v123
    %v159 = vpop.f32.mrb[0].mxu0
    %v160 = vadd.f32 %v107, %v159
    %v161 = vpop.f32.mrb[0].mxu0
    %v162 = vpop.f32.mrb[0].mxu0
    %v163 = vadd.f32 %v107, %v162
    %v164 = vpop.f32.mrb[0].mxu0
    %165 = vdwg.mxu0
    %v166 = vpack.c.bf16 %v163, %v160
    %v168 = vunpack.c.l.b16 %v166
    %v169 = vunpack.c.h.b16 %v166
    %v170 = vpack.c.b16 %v168, %v168
    %v171 = vpack.c.b16 %v169, %v169
    %vm174 = vcmask 257024
    %175 = vst.msk [vmem:[%s9] sm:$0xf] %vm174, %v170
    %176 = vst.msk [vmem:[%s9 + $0x4] sm:$0xf] %vm174, %v171
    %v177 = vld [vmem:[#allocation4] sm:$0xf]
    %v178 = vld [vmem:[#allocation4 + $0x4] sm:$0xf]
    %v179 = vld [vmem:[#allocation4 + $0x8] sm:$0xf]
    %v180 = vld [vmem:[#allocation4 + $0xc] sm:$0xf]
    %v181 = vld [vmem:[#allocation7] sm:$0x1]
    %v183 = vlaneseq
    %v184 = vshrl.u32 %v183, 7
    %v185 = vsub.s32 0, %v184
    %v186 = vrot.slane %v181, %v185
    %v192 = vunpack.c.l.b16 %v177
    %v193 = vunpack.c.l.b16 %v178
    %v194 = vunpack.c.l.b16 %v179
    %v195 = vunpack.c.l.b16 %v180
    %v196 = vpack.c.b16 %v193, %v192
    %v197 = vpack.c.b16 %v195, %v194
    %v201 = vsel %vm121, %v94, 0
    %203 = vmatprep.subr.bf16.mxu0 0
    %204 = vmatpush1.bf16.msra.mxu0 %v196
    %205 = vmatprep.subr.bf16.mxu0 0
    %206 = vmatpush1.bf16.msra.mxu0 %v197
    %207 = vmatprep.subr.bf16.mxu0 0
    %208 = vmatpush1.bf16.msra.mxu0 0
    %209 = vmatprep.subr.bf16.mxu0 0
    %210 = vmatpush1.bf16.msra.mxu0 0
    %211 = vmatprep.subr.bf16.mxu0 0
    %212 = vmatpush1.bf16.msra.mxu0 0
    %213 = vmatprep.subr.bf16.mxu0 0
    %214 = vmatpush1.bf16.msra.mxu0 0
    %215 = vmatprep.subr.bf16.mxu0 0
    %216 = vmatpush1.bf16.msra.mxu0 0
    %217 = vmatprep.subr.bf16.mxu0 0
    %218 = vmatpush1.bf16.msra.mxu0 0
    %219 = vmatprep.subr.bf16.mxu0 0
    %220 = vmatpush1.bf16.msra.mxu0 0
    %221 = vmatprep.subr.bf16.mxu0 0
    %222 = vmatpush1.bf16.msra.mxu0 0
    %223 = vmatprep.subr.bf16.mxu0 0
    %224 = vmatpush1.bf16.msra.mxu0 0
    %225 = vmatprep.subr.bf16.mxu0 0
    %226 = vmatpush1.bf16.msra.mxu0 0
    %227 = vmatprep.subr.bf16.mxu0 0
    %228 = vmatpush1.bf16.msra.mxu0 0
    %229 = vmatprep.subr.bf16.mxu0 0
    %230 = vmatpush1.bf16.msra.mxu0 0
    %231 = vmatprep.subr.bf16.mxu0 0
    %232 = vmatpush1.bf16.msra.mxu0 0
    %233 = vmatprep.subr.bf16.mxu0 0
    %234 = vmatpush1.bf16.msra.mxu0 0
    %235 = vmatprep.mubr.bf16.mxu0 0
    %236 = vmatmul.mubr.bf16.gmra.mrb[0].mxu0 %v201
    %v237 = vpop.f32.mrb[0].mxu0
    %v238 = vadd.f32 %v186, %v237
    %v239 = vpop.f32.mrb[0].mxu0
    %v240 = vpop.f32.mrb[0].mxu0
    %v241 = vadd.f32 %v186, %v240
    %v242 = vpop.f32.mrb[0].mxu0
    %243 = vdwg.mxu0
    %v244 = vpack.c.bf16 %v241, %v238
    %v246 = vunpack.c.l.b16 %v244
    %v247 = vunpack.c.h.b16 %v244
    %v248 = vpack.c.b16 %v246, %v246
    %v249 = vpack.c.b16 %v247, %v247
    %252 = vst.msk [vmem:[%s10] sm:$0xf] %vm174, %v248
    %253 = vst.msk [vmem:[%s10 + $0x4] sm:$0xf] %vm174, %v249
    %v254 = vld [vmem:[#allocation6] sm:$0xf]
    %v255 = vld [vmem:[#allocation6 + $0x4] sm:$0xf]
    %v256 = vld [vmem:[#allocation6 + $0x8] sm:$0xf]
    %v257 = vld [vmem:[#allocation6 + $0xc] sm:$0xf]
    %v258 = vld [vmem:[%s8] sm:$0x1]
    %v260 = vlaneseq
    %v261 = vshrl.u32 %v260, 7
    %v262 = vsub.s32 0, %v261
    %v263 = vrot.slane %v258, %v262
    %v269 = vunpack.c.l.b16 %v254
    %v270 = vunpack.c.l.b16 %v255
    %v271 = vunpack.c.l.b16 %v256
    %v272 = vunpack.c.l.b16 %v257
    %v273 = vpack.c.b16 %v270, %v269
    %v274 = vpack.c.b16 %v272, %v271
    %v278 = vsel %vm121, %v97, 0
    %280 = vmatprep.subr.bf16.mxu0 0
    %281 = vmatpush1.bf16.msra.mxu0 %v273
    %282 = vmatprep.subr.bf16.mxu0 0
    %283 = vmatpush1.bf16.msra.mxu0 %v274
    %284 = vmatprep.subr.bf16.mxu0 0
    %285 = vmatpush1.bf16.msra.mxu0 0
    %286 = vmatprep.subr.bf16.mxu0 0
    %287 = vmatpush1.bf16.msra.mxu0 0
    %288 = vmatprep.subr.bf16.mxu0 0
    %289 = vmatpush1.bf16.msra.mxu0 0
    %290 = vmatprep.subr.bf16.mxu0 0
    %291 = vmatpush1.bf16.msra.mxu0 0
    %292 = vmatprep.subr.bf16.mxu0 0
    %293 = vmatpush1.bf16.msra.mxu0 0
    %294 = vmatprep.subr.bf16.mxu0 0
    %295 = vmatpush1.bf16.msra.mxu0 0
    %296 = vmatprep.subr.bf16.mxu0 0
    %297 = vmatpush1.bf16.msra.mxu0 0
    %298 = vmatprep.subr.bf16.mxu0 0
    %299 = vmatpush1.bf16.msra.mxu0 0
    %300 = vmatprep.subr.bf16.mxu0 0
    %301 = vmatpush1.bf16.msra.mxu0 0
    %302 = vmatprep.subr.bf16.mxu0 0
    %303 = vmatpush1.bf16.msra.mxu0 0
    %304 = vmatprep.subr.bf16.mxu0 0
    %305 = vmatpush1.bf16.msra.mxu0 0
    %306 = vmatprep.subr.bf16.mxu0 0
    %307 = vmatpush1.bf16.msra.mxu0 0
    %308 = vmatprep.subr.bf16.mxu0 0
    %309 = vmatpush1.bf16.msra.mxu0 0
    %310 = vmatprep.subr.bf16.mxu0 0
    %311 = vmatpush1.bf16.msra.mxu0 0
    %312 = vmatprep.mubr.bf16.mxu0 0
    %313 = vmatmul.mubr.bf16.gmra.mrb[0].mxu0 %v278
    %v314 = vpop.f32.mrb[0].mxu0
    %v315 = vadd.f32 %v263, %v314
    %v316 = vpop.f32.mrb[0].mxu0
    %v317 = vpop.f32.mrb[0].mxu0
    %v318 = vadd.f32 %v263, %v317
    %v319 = vpop.f32.mrb[0].mxu0
    %320 = vdwg.mxu0
    %v321 = vpack.c.bf16 %v318, %v315
    %v323 = vunpack.c.l.b16 %v321
    %v324 = vunpack.c.h.b16 %v321
    %v325 = vpack.c.b16 %v323, %v323
    %v326 = vpack.c.b16 %v324, %v324
    %329 = vst.msk [vmem:[%s11] sm:$0xf] %vm174, %v325
    %330 = vst.msk [vmem:[%s11 + $0x4] sm:$0xf] %vm174, %v326
    // Predicated region
    $region54: #{multi_head_attention.2} parent=1 // pred_check
      _
    $region55: #{multi_head_attention.2} parent=1 // pred_check_branch
      %332 = sbr.rel (0) target = $region57
    $region56: #{multi_head_attention.2} parent=1 // pred_region
      _
    $region57: #{multi_head_attention.2} parent=1 // pred_fallthru
      _
    // Predicated region
    $region58: #{multi_head_attention.2} parent=1 // pred_check
      _
    $region59: #{multi_head_attention.2} parent=1 // pred_check_branch
      %334 = sbr.rel (0) target = $region61
    $region60: #{multi_head_attention.2} parent=1 // pred_region
      _
    $region61: #{multi_head_attention.2} parent=1 // pred_fallthru
      _
    // Predicated region
    $region62: #{multi_head_attention.2} parent=1 // pred_check
      _
    $region63: #{multi_head_attention.2} parent=1 // pred_check_branch
      %336 = sbr.rel (0) target = $region65
    $region64: #{multi_head_attention.2} parent=1 // pred_region
      _
    $region65: #{multi_head_attention.2} parent=1 // pred_fallthru
      _
    // Predicated region
    $region66: #{multi_head_attention.2} parent=1 // pred_check
      _
    $region67: #{multi_head_attention.2} parent=1 // pred_check_branch
      %338 = sbr.rel (0) target = $region69
    $region68: #{multi_head_attention.2} parent=1 // pred_region
      _
    $region69: #{multi_head_attention.2} parent=1 // pred_fallthru
      _
    // Predicated region
    $region70: #{multi_head_attention.2} parent=1 // pred_check
      _
    $region71: #{multi_head_attention.2} parent=1 // pred_check_branch
      %340 = sbr.rel (0) target = $region73
    $region72: #{multi_head_attention.2} parent=1 // pred_region
      _
    $region73: #{multi_head_attention.2} parent=1 // pred_fallthru
      _
    // Predicated region
    $region74: #{multi_head_attention.2} parent=1 // pred_check
      _
    $region75: #{multi_head_attention.2} parent=1 // pred_check_branch
      %342 = sbr.rel (0) target = $region77
    $region76: #{multi_head_attention.2} parent=1 // pred_region
      _
    $region77: #{multi_head_attention.2} parent=1 // pred_fallthru
      _
    %343 = vsyncpa [#allocation3], 1
    %344 = vsyncpa [#allocation5], 1
    %345 = vsyncpa [#allocation8], 1

// kernel: multi_head_attention.3
$region0: #{multi_head_attention.3}
  #allocation0 [shape = 'u32[]', space=smem, size = 0x4, offset = 0x4, fixed_abs, tag = 'smem constant byte address 0x4 - core index']
  #allocation1 [shape = 'u32[144,128]{1,0:T(1,128)}', space=vmem, size = 0x12000, scoped, tag = 'internal scratch']
  #allocation2 [shape = 'bf16[8,32]{1,0:T(8,128)(2,1)}', space=vmem, size = 0x800, scoped, tag = 'scratch operand']
  %s0 = inlined_call_operand.vmem [shape: bf16[2,8,32], index: 0, kind: input, shape index: {}]
  %s1 = inlined_call_operand.vmem [shape: bf16[2,8,32], index: 1, kind: input, shape index: {}]
  %s2 = inlined_call_operand.vmem [shape: bf16[2,8,32], index: 2, kind: input, shape index: {}]
  %s3 = inlined_call_operand.vmem [shape: bf16[32,32], index: 3, kind: input, shape index: {}]
  %s4 = inlined_call_operand.vmem [shape: f32[1,32], index: 4, kind: input, shape index: {}]
  %s5 = inlined_call_operand.hbm [shape: f32[2,8,32], index: 5, kind: output, shape index: {0}]
  %s6 = inlined_call_operand.hbm [shape: f32[2,4,8,8], index: 6, kind: output, shape index: {1}]
  %7 = xla_tuple %s5, %s6
  %s8 = sld [smem:[#allocation0]]
  $region61: #{multi_head_attention.3} parent=0
    _
  %s10 = ssub.s32 1, %s8
  %s11 = scalar_select 0, %s10, %s8
  $region1: #{multi_head_attention.3} parent=0
    #allocation3 [shape = 'u8[8192]{0}', space=vmem, size = 0x2000, scoped, tag = 'output window, operand 0']
    #allocation4 [shape = 's32[2]{0}', space=sflag, size = 0x8, scoped, tag = 'scoped memory for multi_head_attention.3']
    #allocation5 [shape = 'u8[32768]{0}', space=vmem, size = 0x8000, scoped, tag = 'output window, operand 1']
    #allocation6 [shape = 's32[2]{0}', space=sflag, size = 0x8, scoped, tag = 'scoped memory for multi_head_attention.3']
    %12 = vsyncpa [#allocation4], 0
    %s13 = scalar_lea.sflag [#allocation4], 1
    %14 = vsyncpa %s13, 0
    %15 = vsyncpa [#allocation6], 0
    %s16 = scalar_lea.sflag [#allocation6], 1
    %17 = vsyncpa %s16, 0
    loop: start=0, step=1, limit=4
    $region2: #{multi_head_attention.3} parent=1 // loop_pre_header
      _
    $region3: #{multi_head_attention.3} parent=1 // loop_header
      %s19 = sphi 0, %s23
      %p20 = scmp.ge.s32.totalorder %s19, 4
      %s26 = sphi 0, %s38
      %s27 = sphi 0, %s34
      %s28 = sphi 0, %s26
      %s29 = sphi 0, %s27
      %s30 = sphi 0, %s28
      %s31 = sphi 0, %s29
      %s43 = sphi 0, %s45
      %s46 = sphi 0, %s43
      %s47 = sphi 0, %s46
      %s63 = sphi 0, %s47
      %s69 = sphi 0, %s71
      %s72 = sphi 0, %s69
      %s73 = sphi 0, %s72
      %s89 = sphi 0, %s73
      %s95 = sphi 0, %s97
      %s98 = sphi 0, %s95
      %s99 = sphi 0, %s98
      %s115 = sphi 0, %s99
      %s119 = sphi 0, %s119
      %s121 = sphi 0, %s119
      %s122 = sphi 0, %s121
      %s136 = sphi 0, %s122
      %s140 = sphi 0, %s140
      %s142 = sphi 0, %s140
      %s143 = sphi 0, %s142
      %s157 = sphi 0, %s143
      %s165 = sphi 0, %s167
      %s168 = sphi 0, %s165
      %s169 = sphi 0, %s168
      %s185 = sphi 0, %s169
      %s193 = sphi 0, %s195
      %s196 = sphi 0, %s193
      %s197 = sphi 0, %s196
      %s213 = sphi 0, %s197
    $region4: #{multi_head_attention.3} parent=1 // loop_header_branch
      %22 = sbr.rel (%p20) target = $region8
    $region5: #{multi_head_attention.3} parent=1 // loop_body
      %s24 = ssub.s32 %s19, 1
      %s25 = ssub.s32 %s19, 2
      %s32 = sadd.s32 1, %s27
      %p33 = scmp.ge.s32.totalorder %s32, 1
      %s34 = scalar_select %p33, 0, %s32
      %s35 = sadd.s32 1, %s26
      %s36 = scalar_select %p33, %s35, %s26
      %p37 = scmp.ge.s32.totalorder %s36, 2
      %s38 = scalar_select %p37, 0, %s36
      %s39 = ssub.s32 %s26, %s38
      %s40 = ssub.s32 %s27, %s34
      %s41 = sor.u32 %s39, %s40
      %p42 = scmp.eq.s32.totalorder %s41, 0
      %s44 = sadd.s32 %s43, 1
      %s45 = scalar_select %p42, %s43, %s44
      %p48 = pneg %p42
      %p49 = scmp.eq.s32.totalorder %s19, 1
      %p50 = por %p48, %p49
      %p51 = scmp.ne.s32.totalorder %s43, %s46
      %p52 = scmp.eq.s32.totalorder %s19, 0
      %p53 = por %p51, %p52
      %p54 = scmp.ne.s32.totalorder %s43, %s46
      %p55 = scmp.eq.s32.totalorder %s24, 1
      %p56 = por %p54, %p55
      %p57 = scmp.ne.s32.totalorder %s46, %s47
      %p58 = scmp.eq.s32.totalorder %s24, 0
      %p59 = por %p57, %p58
      %p60 = scmp.ne.s32.totalorder %s46, %s47
      %p61 = scmp.eq.s32.totalorder %s25, 1
      %p62 = por %p60, %p61
      %p64 = scmp.ne.s32.totalorder %s47, %s63
      %p65 = scmp.eq.s32.totalorder %s25, 0
      %p66 = por %p64, %p65
      %s67 = ssub.s32 %s26, %s38
      %p68 = scmp.eq.s32.totalorder %s67, 0
      %s70 = sadd.s32 %s69, 1
      %s71 = scalar_select %p68, %s69, %s70
      %p74 = pneg %p68
      %p75 = scmp.eq.s32.totalorder %s19, 1
      %p76 = por %p74, %p75
      %p77 = scmp.ne.s32.totalorder %s69, %s72
      %p78 = scmp.eq.s32.totalorder %s19, 0
      %p79 = por %p77, %p78
      %p80 = scmp.ne.s32.totalorder %s69, %s72
      %p81 = scmp.eq.s32.totalorder %s24, 1
      %p82 = por %p80, %p81
      %p83 = scmp.ne.s32.totalorder %s72, %s73
      %p84 = scmp.eq.s32.totalorder %s24, 0
      %p85 = por %p83, %p84
      %p86 = scmp.ne.s32.totalorder %s72, %s73
      %p87 = scmp.eq.s32.totalorder %s25, 1
      %p88 = por %p86, %p87
      %p90 = scmp.ne.s32.totalorder %s73, %s89
      %p91 = scmp.eq.s32.totalorder %s25, 0
      %p92 = por %p90, %p91
      %s93 = ssub.s32 %s26, %s38
      %p94 = scmp.eq.s32.totalorder %s93, 0
      %s96 = sadd.s32 %s95, 1
      %s97 = scalar_select %p94, %s95, %s96
      %p100 = pneg %p94
      %p101 = scmp.eq.s32.totalorder %s19, 1
      %p102 = por %p100, %p101
      %p103 = scmp.ne.s32.totalorder %s95, %s98
      %p104 = scmp.eq.s32.totalorder %s19, 0
      %p105 = por %p103, %p104
      %p106 = scmp.ne.s32.totalorder %s95, %s98
      %p107 = scmp.eq.s32.totalorder %s24, 1
      %p108 = por %p106, %p107
      %p109 = scmp.ne.s32.totalorder %s98, %s99
      %p110 = scmp.eq.s32.totalorder %s24, 0
      %p111 = por %p109, %p110
      %p112 = scmp.ne.s32.totalorder %s98, %s99
      %p113 = scmp.eq.s32.totalorder %s25, 1
      %p114 = por %p112, %p113
      %p116 = scmp.ne.s32.totalorder %s99, %s115
      %p117 = scmp.eq.s32.totalorder %s25, 0
      %p118 = por %p116, %p117
      %s120 = sadd.s32 %s119, 1
      %p123 = scmp.eq.s32.totalorder %s19, 1
      %p124 = scmp.ne.s32.totalorder %s119, %s121
      %p125 = scmp.eq.s32.totalorder %s19, 0
      %p126 = por %p124, %p125
      %p127 = scmp.ne.s32.totalorder %s119, %s121
      %p128 = scmp.eq.s32.totalorder %s24, 1
      %p129 = por %p127, %p128
      %p130 = scmp.ne.s32.totalorder %s121, %s122
      %p131 = scmp.eq.s32.totalorder %s24, 0
      %p132 = por %p130, %p131
      %p133 = scmp.ne.s32.totalorder %s121, %s122
      %p134 = scmp.eq.s32.totalorder %s25, 1
      %p135 = por %p133, %p134
      %p137 = scmp.ne.s32.totalorder %s122, %s136
      %p138 = scmp.eq.s32.totalorder %s25, 0
      %p139 = por %p137, %p138
      %s141 = sadd.s32 %s140, 1
      %p144 = scmp.eq.s32.totalorder %s19, 1
      %p145 = scmp.ne.s32.totalorder %s140, %s142
      %p146 = scmp.eq.s32.totalorder %s19, 0
      %p147 = por %p145, %p146
      %p148 = scmp.ne.s32.totalorder %s140, %s142
      %p149 = scmp.eq.s32.totalorder %s24, 1
      %p150 = por %p148, %p149
      %p151 = scmp.ne.s32.totalorder %s142, %s143
      %p152 = scmp.eq.s32.totalorder %s24, 0
      %p153 = por %p151, %p152
      %p154 = scmp.ne.s32.totalorder %s142, %s143
      %p155 = scmp.eq.s32.totalorder %s25, 1
      %p156 = por %p154, %p155
      %p158 = scmp.ne.s32.totalorder %s143, %s157
      %p159 = scmp.eq.s32.totalorder %s25, 0
      %p160 = por %p158, %p159
      %s161 = ssub.s32 %s26, %s38
      %s162 = ssub.s32 %s27, %s34
      %s163 = sor.u32 %s161, %s162
      %p164 = scmp.eq.s32.totalorder %s163, 0
      %s166 = sadd.s32 %s165, 1
      %s167 = scalar_select %p164, %s165, %s166
      %p170 = pneg %p164
      %p171 = scmp.eq.s32.totalorder %s19, 1
      %p172 = por %p170, %p171
      %p173 = scmp.ne.s32.totalorder %s165, %s168
      %p174 = scmp.eq.s32.totalorder %s19, 0
      %p175 = por %p173, %p174
      %p176 = scmp.ne.s32.totalorder %s165, %s168
      %p177 = scmp.eq.s32.totalorder %s24, 1
      %p178 = por %p176, %p177
      %p179 = scmp.ne.s32.totalorder %s168, %s169
      %p180 = scmp.eq.s32.totalorder %s24, 0
      %p181 = por %p179, %p180
      %p182 = scmp.ne.s32.totalorder %s168, %s169
      %p183 = scmp.eq.s32.totalorder %s25, 1
      %p184 = por %p182, %p183
      %p186 = scmp.ne.s32.totalorder %s169, %s185
      %p187 = scmp.eq.s32.totalorder %s25, 0
      %p188 = por %p186, %p187
      %s189 = ssub.s32 %s26, %s38
      %s190 = ssub.s32 %s27, %s34
      %s191 = sor.u32 %s189, %s190
      %p192 = scmp.eq.s32.totalorder %s191, 0
      %s194 = sadd.s32 %s193, 1
      %s195 = scalar_select %p192, %s193, %s194
      %p198 = pneg %p192
      %p199 = scmp.eq.s32.totalorder %s19, 1
      %p200 = por %p198, %p199
      %p201 = scmp.ne.s32.totalorder %s193, %s196
      %p202 = scmp.eq.s32.totalorder %s19, 0
      %p203 = por %p201, %p202
      %p204 = scmp.ne.s32.totalorder %s193, %s196
      %p205 = scmp.eq.s32.totalorder %s24, 1
      %p206 = por %p204, %p205
      %p207 = scmp.ne.s32.totalorder %s196, %s197
      %p208 = scmp.eq.s32.totalorder %s24, 0
      %p209 = por %p207, %p208
      %p210 = scmp.ne.s32.totalorder %s196, %s197
      %p211 = scmp.eq.s32.totalorder %s25, 1
      %p212 = por %p210, %p211
      %p214 = scmp.ne.s32.totalorder %s197, %s213
      %p215 = scmp.eq.s32.totalorder %s25, 0
      %p216 = por %p214, %p215
      %p217 = scmp.le.s32.totalorder 1, %s19
      %p218 = scmp.lt.s32.totalorder %s19, 3
      %p219 = pnand %p217, %p218
      %p220 = pneg %p219
      // Predicated region
      $region9: #{multi_head_attention.3} parent=5 // pred_check
        _
      $region10: #{multi_head_attention.3} parent=5 // pred_check_branch
        %222 = sbr.rel (%p219) target = $region12
      $region11: #{multi_head_attention.3} parent=5 // pred_region
        %s223 = ssub.s32 %s19, 1
        // Predicated region
        $region13: #{multi_head_attention.3} parent=11 // pred_check
          %p224 = pneg %p132
        $region14: #{multi_head_attention.3} parent=11 // pred_check_branch
          %226 = sbr.rel (%p224) target = $region16
        $region15: #{multi_head_attention.3} parent=11 // pred_region
          _
        $region16: #{multi_head_attention.3} parent=11 // pred_fallthru
          _
        // Predicated region
        $region17: #{multi_head_attention.3} parent=11 // pred_check
          %p227 = pneg %p153
        $region18: #{multi_head_attention.3} parent=11 // pred_check_branch
          %229 = sbr.rel (%p227) target = $region20
        $region19: #{multi_head_attention.3} parent=11 // pred_region
          _
        $region20: #{multi_head_attention.3} parent=11 // pred_fallthru
          _
      $region12: #{multi_head_attention.3} parent=5 // pred_fallthru
        _
      %p230 = scmp.lt.s32.totalorder %s19, 2
      // Predicated region
      $region21: #{multi_head_attention.3} parent=5 // pred_check
        %p231 = pneg %p230
      $region22: #{multi_head_attention.3} parent=5 // pred_check_branch
        %233 = sbr.rel (%p231) target = $region24
      $region23: #{multi_head_attention.3} parent=5 // pred_region
        // Predicated region
        $region25: #{multi_head_attention.3} parent=23 // pred_check
          %p234 = pneg %p53
        $region26: #{multi_head_attention.3} parent=23 // pred_check_branch
          %236 = sbr.rel (%p234) target = $region28
        $region27: #{multi_head_attention.3} parent=23 // pred_region
          %p237 = scmp.lt.s32.totalorder %s26, 1
          %s238 = scalar_select %p237, %s26, 1
          %p239 = scmp.lt.s32.totalorder %s27, 0
          %s240 = scalar_select %p239, %s27, 0
          %s241 = sadd.s32 %s240, %s238
          %s242 = smul.addr %s241, 4
          %s243 = scalar_lea.vmem %s0, %s242
        $region28: #{multi_head_attention.3} parent=23 // pred_fallthru
          _
        // Predicated region
        $region29: #{multi_head_attention.3} parent=23 // pred_check
          %p244 = pneg %p79
        $region30: #{multi_head_attention.3} parent=23 // pred_check_branch
          %246 = sbr.rel (%p244) target = $region32
        $region31: #{multi_head_attention.3} parent=23 // pred_region
          %p247 = scmp.lt.s32.totalorder %s26, 1
          %s248 = scalar_select %p247, %s26, 1
          %s249 = smul.addr %s248, 4
          %s250 = scalar_lea.vmem %s1, %s249
        $region32: #{multi_head_attention.3} parent=23 // pred_fallthru
          _
        // Predicated region
        $region33: #{multi_head_attention.3} parent=23 // pred_check
          %p251 = pneg %p105
        $region34: #{multi_head_attention.3} parent=23 // pred_check_branch
          %253 = sbr.rel (%p251) target = $region36
        $region35: #{multi_head_attention.3} parent=23 // pred_region
          %p254 = scmp.lt.s32.totalorder %s26, 1
          %s255 = scalar_select %p254, %s26, 1
          %s256 = smul.addr %s255, 4
          %s257 = scalar_lea.vmem %s2, %s256
        $region36: #{multi_head_attention.3} parent=23 // pred_fallthru
          _
      $region24: #{multi_head_attention.3} parent=5 // pred_fallthru
        _
      %p258 = scmp.le.s32.totalorder 1, %s19
      %p259 = scmp.lt.s32.totalorder %s19, 3
      %p260 = pnand %p258, %p259
      %p261 = pneg %p260
      // Predicated region
      $region37: #{multi_head_attention.3} parent=5 // pred_check
        _
      $region38: #{multi_head_attention.3} parent=5 // pred_check_branch
        %263 = sbr.rel (%p260) target = $region40
      $region39: #{multi_head_attention.3} parent=5 // pred_region
        %s264 = ssub.s32 %s19, 1
        %p265 = scmp.lt.s32.totalorder %s28, 1
        %s266 = scalar_select %p265, %s28, 1
        %p267 = scmp.lt.s32.totalorder %s29, 0
        %s268 = scalar_select %p267, %s29, 0
        %s269 = sadd.s32 %s268, %s266
        %s270 = smul.addr %s269, 4
        %s271 = scalar_lea.vmem %s0, %s270
        %p272 = pneg %p59
        %p273 = pneg %p56
        %p274 = scmp.lt.s32.totalorder %s28, 1
        %s275 = scalar_select %p274, %s28, 1
        %s276 = smul.addr %s275, 4
        %s277 = scalar_lea.vmem %s1, %s276
        %p278 = pneg %p85
        %p279 = pneg %p82
        %p280 = scmp.lt.s32.totalorder %s28, 1
        %s281 = scalar_select %p280, %s28, 1
        %s282 = smul.addr %s281, 4
        %s283 = scalar_lea.vmem %s2, %s282
        %p284 = pneg %p111
        %p285 = pneg %p108
        %p286 = pneg %p132
        %p287 = pneg %p129
        %p288 = pneg %p153
        %p289 = pneg %p150
        %p290 = pneg %p181
        %p291 = pneg %p178
        %s292 = sand.u32 %s168, 1
        %s293 = scalar_lea.sflag [#allocation4], %s292
        %s294 = sand.u32 %s168, 1
        %s295 = smul.addr %s294, 8
        %s296 = scalar_lea.vmem [#allocation3], %s295
        %p297 = pneg %p209
        %p298 = pneg %p206
        %s299 = sand.u32 %s196, 1
        %s300 = scalar_lea.sflag [#allocation6], %s299
        %s301 = sand.u32 %s196, 1
        %s302 = smul.addr %s301, 32
        %s303 = scalar_lea.vmem [#allocation5], %s302
        %p304 = scmp.lt.s32.totalorder %s28, 1
        %s305 = scalar_select %p304, %s28, 1
        %p306 = scmp.lt.s32.totalorder %s29, 0
        %s307 = scalar_select %p306, %s29, 0
        %s308 = sadd.s32 %s307, %s305
        %s309 = smul.addr %s308, 4
        %s310 = scalar_lea.vmem %s0, %s309
        %p311 = scmp.lt.s32.totalorder %s28, 1
        %s312 = scalar_select %p311, %s28, 1
        %s313 = smul.addr %s312, 4
        %s314 = scalar_lea.vmem %s1, %s313
        %p315 = scmp.lt.s32.totalorder %s28, 1
        %s316 = scalar_select %p315, %s28, 1
        %s317 = smul.addr %s316, 4
        %s318 = scalar_lea.vmem %s2, %s317
        %v320 = vld [vmem:[%s310] sm:$0xf]
        %v321 = vld [vmem:[%s314] sm:$0xf]
        %v322 = vld [vmem:[%s318] sm:$0xf]
        %vm323 = vcmask 64512
        %v325 = vsel %vm323, %v320, 0
        %v328 = vsel %vm323, %v321, 0
        %330 = vmatprep.subr.bf16.mxu0 0
        %331 = vmatpush1.bf16.xpose.msra.mxu0 %v328
        %332 = vmatprep.subr.bf16.mxu0 0
        %333 = vmatpush1.bf16.xpose.msra.mxu0 0
        %334 = vmatprep.subr.bf16.mxu0 0
        %335 = vmatpush1.bf16.xpose.msra.mxu0 0
        %336 = vmatprep.subr.bf16.mxu0 0
        %337 = vmatpush1.bf16.xpose.msra.mxu0 0
        %338 = vmatprep.subr.bf16.mxu0 0
        %339 = vmatpush1.bf16.xpose.msra.mxu0 0
        %340 = vmatprep.subr.bf16.mxu0 0
        %341 = vmatpush1.bf16.xpose.msra.mxu0 0
        %342 = vmatprep.subr.bf16.mxu0 0
        %343 = vmatpush1.bf16.xpose.msra.mxu0 0
        %344 = vmatprep.subr.bf16.mxu0 0
        %345 = vmatpush1.bf16.xpose.msra.mxu0 0
        %346 = vmatprep.subr.bf16.mxu0 0
        %347 = vmatpush1.bf16.xpose.msra.mxu0 0
        %348 = vmatprep.subr.bf16.mxu0 0
        %349 = vmatpush1.bf16.xpose.msra.mxu0 0
        %350 = vmatprep.subr.bf16.mxu0 0
        %351 = vmatpush1.bf16.xpose.msra.mxu0 0
        %352 = vmatprep.subr.bf16.mxu0 0
        %353 = vmatpush1.bf16.xpose.msra.mxu0 0
        %354 = vmatprep.subr.bf16.mxu0 0
        %355 = vmatpush1.bf16.xpose.msra.mxu0 0
        %356 = vmatprep.subr.bf16.mxu0 0
        %357 = vmatpush1.bf16.xpose.msra.mxu0 0
        %358 = vmatprep.subr.bf16.mxu0 0
        %359 = vmatpush1.bf16.xpose.msra.mxu0 0
        %360 = vmatprep.subr.bf16.mxu0 0
        %361 = vmatpush1.bf16.xpose.msra.mxu0 0
        %362 = vmatprep.mubr.bf16.mxu0 0
        %363 = vmatmul.mubr.bf16.gmra.mrb[0].mxu0 %v325
        %v364 = vpop.f32.mrb[0].mxu0
        %v365 = vadd.f32 0.0, %v364
        %v366 = vpop.f32.mrb[0].mxu0
        %v367 = vpop.f32.mrb[0].mxu0
        %v368 = vpop.f32.mrb[0].mxu0
        %369 = vdwg.mxu0
        %v370 = vsel %vm323, %v365, -inf
        %371 = vmax.xlane.f32.xlu0 %v370
        %v372 = vpop.xlane.xlu0 %371
        %v373 = vsub.f32 %v365, %v372
        %v374 = vmul.f32 %v373, 1.442695
        %v375 = vpow.pop %v374
        %v376 = vsel %vm323, %v375, 0.0
        %377 = vadd.xlane.f32.xlu0 %v376
        %v378 = vpop.xlane.xlu0 %377
        %v379 = vrcp.pop %v378
        %v380 = vmul.f32 %v375, %v379
        %381 = vst.msk [vmem:[%s303] sm:$0xff] %vm323, %v380
        %v382 = vpack.c.bf16 %v380, %v380
        %v384 = vsel %vm323, %v382, 0
        %vm386 = vcmask 1043456
        %v388 = vsel %vm386, %v322, 0
        %390 = vmatprep.subr.bf16.mxu0 0
        %391 = vmatpush1.bf16.msra.mxu0 %v388
        %392 = vmatprep.subr.bf16.mxu0 0
        %393 = vmatpush1.bf16.msra.mxu0 0
        %394 = vmatprep.subr.bf16.mxu0 0
        %395 = vmatpush1.bf16.msra.mxu0 0
        %396 = vmatprep.subr.bf16.mxu0 0
        %397 = vmatpush1.bf16.msra.mxu0 0
        %398 = vmatprep.subr.bf16.mxu0 0
        %399 = vmatpush1.bf16.msra.mxu0 0
        %400 = vmatprep.subr.bf16.mxu0 0
        %401 = vmatpush1.bf16.msra.mxu0 0
        %402 = vmatprep.subr.bf16.mxu0 0
        %403 = vmatpush1.bf16.msra.mxu0 0
        %404 = vmatprep.subr.bf16.mxu0 0
        %405 = vmatpush1.bf16.msra.mxu0 0
        %406 = vmatprep.subr.bf16.mxu0 0
        %407 = vmatpush1.bf16.msra.mxu0 0
        %408 = vmatprep.subr.bf16.mxu0 0
        %409 = vmatpush1.bf16.msra.mxu0 0
        %410 = vmatprep.subr.bf16.mxu0 0
        %411 = vmatpush1.bf16.msra.mxu0 0
        %412 = vmatprep.subr.bf16.mxu0 0
        %413 = vmatpush1.bf16.msra.mxu0 0
        %414 = vmatprep.subr.bf16.mxu0 0
        %415 = vmatpush1.bf16.msra.mxu0 0
        %416 = vmatprep.subr.bf16.mxu0 0
        %417 = vmatpush1.bf16.msra.mxu0 0
        %418 = vmatprep.subr.bf16.mxu0 0
        %419 = vmatpush1.bf16.msra.mxu0 0
        %420 = vmatprep.subr.bf16.mxu0 0
        %421 = vmatpush1.bf16.msra.mxu0 0
        %422 = vmatprep.mubr.bf16.mxu0 0
        %423 = vmatmul.mubr.bf16.gmra.mrb[0].mxu0 %v384
        %v424 = vpop.f32.mrb[0].mxu0
        %v425 = vadd.f32 0.0, %v424
        %v426 = vpop.f32.mrb[0].mxu0
        %v427 = vpop.f32.mrb[0].mxu0
        %v428 = vpop.f32.mrb[0].mxu0
        %429 = vdwg.mxu0
        %v430 = vpack.c.bf16 %v425, %v425
        %vm431 = vcmask 60416
        %432 = vst.msk [vmem:[#allocation2] sm:$0xf] %vm431, %v430
        %v434 = vunpack.c.l.b16 %v320
        %v435 = vpack.c.b16 %v434, %v434
        %436 = vrot.lane.b32.xlu0 %v435, 120
        %v437 = vpop.permute.xlu0 %436
        %v439 = vunpack.c.l.b16 %v321
        %v440 = vpack.c.b16 %v439, %v439
        %441 = vrot.lane.b32.xlu0 %v440, 120
        %v442 = vpop.permute.xlu0 %441
        %v444 = vsel %vm323, %v437, 0
        %v447 = vsel %vm323, %v442, 0
        %449 = vmatprep.subr.bf16.mxu0 0
        %450 = vmatpush1.bf16.xpose.msra.mxu0 %v447
        %451 = vmatprep.subr.bf16.mxu0 0
        %452 = vmatpush1.bf16.xpose.msra.mxu0 0
        %453 = vmatprep.subr.bf16.mxu0 0
        %454 = vmatpush1.bf16.xpose.msra.mxu0 0
        %455 = vmatprep.subr.bf16.mxu0 0
        %456 = vmatpush1.bf16.xpose.msra.mxu0 0
        %457 = vmatprep.subr.bf16.mxu0 0
        %458 = vmatpush1.bf16.xpose.msra.mxu0 0
        %459 = vmatprep.subr.bf16.mxu0 0
        %460 = vmatpush1.bf16.xpose.msra.mxu0 0
        %461 = vmatprep.subr.bf16.mxu0 0
        %462 = vmatpush1.bf16.xpose.msra.mxu0 0
        %463 = vmatprep.subr.bf16.mxu0 0
        %464 = vmatpush1.bf16.xpose.msra.mxu0 0
        %465 = vmatprep.subr.bf16.mxu0 0
        %466 = vmatpush1.bf16.xpose.msra.mxu0 0
        %467 = vmatprep.subr.bf16.mxu0 0
        %468 = vmatpush1.bf16.xpose.msra.mxu0 0
        %469 = vmatprep.subr.bf16.mxu0 0
        %470 = vmatpush1.bf16.xpose.msra.mxu0 0
        %471 = vmatprep.subr.bf16.mxu0 0
        %472 = vmatpush1.bf16.xpose.msra.mxu0 0
        %473 = vmatprep.subr.bf16.mxu0 0
        %474 = vmatpush1.bf16.xpose.msra.mxu0 0
        %475 = vmatprep.subr.bf16.mxu0 0
        %476 = vmatpush1.bf16.xpose.msra.mxu0 0
        %477 = vmatprep.subr.bf16.mxu0 0
        %478 = vmatpush1.bf16.xpose.msra.mxu0 0
        %479 = vmatprep.subr.bf16.mxu0 0
        %480 = vmatpush1.bf16.xpose.msra.mxu0 0
        %481 = vmatprep.mubr.bf16.mxu0 0
        %482 = vmatmul.mubr.bf16.gmra.mrb[0].mxu0 %v444
        %v483 = vpop.f32.mrb[0].mxu0
        %v484 = vadd.f32 0.0, %v483
        %v485 = vpop.f32.mrb[0].mxu0
        %v486 = vpop.f32.mrb[0].mxu0
        %v487 = vpop.f32.mrb[0].mxu0
        %488 = vdwg.mxu0
        %v489 = vsel %vm323, %v484, -inf
        %490 = vmax.xlane.f32.xlu0 %v489
        %v491 = vpop.xlane.xlu0 %490
        %v492 = vsub.f32 %v484, %v491
        %v493 = vmul.f32 %v492, 1.442695
        %v494 = vpow.pop %v493
        %v495 = vsel %vm323, %v494, 0.0
        %496 = vadd.xlane.f32.xlu0 %v495
        %v497 = vpop.xlane.xlu0 %496
        %v498 = vrcp.pop %v497
        %v499 = vmul.f32 %v494, %v498
        %s500 = scalar_lea.vmem %s303, 8 [#allocation5]
        %501 = vst.msk [vmem:[%s500] sm:$0xff] %vm323, %v499
        %v502 = vpack.c.bf16 %v499, %v499
        %v504 = vunpack.c.l.b16 %v322
        %v505 = vpack.c.b16 %v504, %v504
        %506 = vrot.lane.b32.xlu0 %v505, 120
        %v507 = vpop.permute.xlu0 %506
        %v509 = vsel %vm323, %v502, 0
        %v512 = vsel %vm386, %v507, 0
        %514 = vmatprep.subr.bf16.mxu0 0
        %515 = vmatpush1.bf16.msra.mxu0 %v512
        %516 = vmatprep.subr.bf16.mxu0 0
        %517 = vmatpush1.bf16.msra.mxu0 0
        %518 = vmatprep.subr.bf16.mxu0 0
        %519 = vmatpush1.bf16.msra.mxu0 0
        %520 = vmatprep.subr.bf16.mxu0 0
        %521 = vmatpush1.bf16.msra.mxu0 0
        %522 = vmatprep.subr.bf16.mxu0 0
        %523 = vmatpush1.bf16.msra.mxu0 0
        %524 = vmatprep.subr.bf16.mxu0 0
        %525 = vmatpush1.bf16.msra.mxu0 0
        %526 = vmatprep.subr.bf16.mxu0 0
        %527 = vmatpush1.bf16.msra.mxu0 0
        %528 = vmatprep.subr.bf16.mxu0 0
        %529 = vmatpush1.bf16.msra.mxu0 0
        %530 = vmatprep.subr.bf16.mxu0 0
        %531 = vmatpush1.bf16.msra.mxu0 0
        %532 = vmatprep.subr.bf16.mxu0 0
        %533 = vmatpush1.bf16.msra.mxu0 0
        %534 = vmatprep.subr.bf16.mxu0 0
        %535 = vmatpush1.bf16.msra.mxu0 0
        %536 = vmatprep.subr.bf16.mxu0 0
        %537 = vmatpush1.bf16.msra.mxu0 0
        %538 = vmatprep.subr.bf16.mxu0 0
        %539 = vmatpush1.bf16.msra.mxu0 0
        %540 = vmatprep.subr.bf16.mxu0 0
        %541 = vmatpush1.bf16.msra.mxu0 0
        %542 = vmatprep.subr.bf16.mxu0 0
        %543 = vmatpush1.bf16.msra.mxu0 0
        %544 = vmatprep.subr.bf16.mxu0 0
        %545 = vmatpush1.bf16.msra.mxu0 0
        %546 = vmatprep.mubr.bf16.mxu0 0
        %547 = vmatmul.mubr.bf16.gmra.mrb[0].mxu0 %v509
        %v548 = vpop.f32.mrb[0].mxu0
        %v549 = vadd.f32 0.0, %v548
        %v550 = vpop.f32.mrb[0].mxu0
        %v551 = vpop.f32.mrb[0].mxu0
        %v552 = vpop.f32.mrb[0].mxu0
        %553 = vdwg.mxu0
        %v554 = vpack.c.bf16 %v549, %v549
        %v556 = vunpack.c.l.b16 %v554
        %v557 = vpack.c.b16 %v556, %v556
        %558 = vrot.lane.b32.xlu0 %v557, 8
        %v559 = vpop.permute.xlu0 %558
        %vm561 = vcmask 126016
        %562 = vst.msk [vmem:[#allocation2] sm:$0xf] %vm561, %v559
        %563 = vrot.lane.b32.xlu0 %v435, 112
        %v564 = vpop.permute.xlu0 %563
        %565 = vrot.lane.b32.xlu0 %v440, 112
        %v566 = vpop.permute.xlu0 %565
        %v568 = vsel %vm323, %v564, 0
        %v571 = vsel %vm323, %v566, 0
        %573 = vmatprep.subr.bf16.mxu0 0
        %574 = vmatpush1.bf16.xpose.msra.mxu0 %v571
        %575 = vmatprep.subr.bf16.mxu0 0
        %576 = vmatpush1.bf16.xpose.msra.mxu0 0
        %577 = vmatprep.subr.bf16.mxu0 0
        %578 = vmatpush1.bf16.xpose.msra.mxu0 0
        %579 = vmatprep.subr.bf16.mxu0 0
        %580 = vmatpush1.bf16.xpose.msra.mxu0 0
        %581 = vmatprep.subr.bf16.mxu0 0
        %582 = vmatpush1.bf16.xpose.msra.mxu0 0
        %583 = vmatprep.subr.bf16.mxu0 0
        %584 = vmatpush1.bf16.xpose.msra.mxu0 0
        %585 = vmatprep.subr.bf16.mxu0 0
        %586 = vmatpush1.bf16.xpose.msra.mxu0 0
        %587 = vmatprep.subr.bf16.mxu0 0
        %588 = vmatpush1.bf16.xpose.msra.mxu0 0
        %589 = vmatprep.subr.bf16.mxu0 0
        %590 = vmatpush1.bf16.xpose.msra.mxu0 0
        %591 = vmatprep.subr.bf16.mxu0 0
        %592 = vmatpush1.bf16.xpose.msra.mxu0 0
        %593 = vmatprep.subr.bf16.mxu0 0
        %594 = vmatpush1.bf16.xpose.msra.mxu0 0
        %595 = vmatprep.subr.bf16.mxu0 0
        %596 = vmatpush1.bf16.xpose.msra.mxu0 0
        %597 = vmatprep.subr.bf16.mxu0 0
        %598 = vmatpush1.bf16.xpose.msra.mxu0 0
        %599 = vmatprep.subr.bf16.mxu0 0
        %600 = vmatpush1.bf16.xpose.msra.mxu0 0
        %601 = vmatprep.subr.bf16.mxu0 0
        %602 = vmatpush1.bf16.xpose.msra.mxu0 0
        %603 = vmatprep.subr.bf16.mxu0 0
        %604 = vmatpush1.bf16.xpose.msra.mxu0 0
        %605 = vmatprep.mubr.bf16.mxu0 0
        %606 = vmatmul.mubr.bf16.gmra.mrb[0].mxu0 %v568
        %v607 = vpop.f32.mrb[0].mxu0
        %v608 = vadd.f32 0.0, %v607
        %v609 = vpop.f32.mrb[0].mxu0
        %v610 = vpop.f32.mrb[0].mxu0
        %v611 = vpop.f32.mrb[0].mxu0
        %612 = vdwg.mxu0
        %v613 = vsel %vm323, %v608, -inf
        %614 = vmax.xlane.f32.xlu0 %v613
        %v615 = vpop.xlane.xlu0 %614
        %v616 = vsub.f32 %v608, %v615
        %v617 = vmul.f32 %v616, 1.442695
        %v618 = vpow.pop %v617
        %v619 = vsel %vm323, %v618, 0.0
        %620 = vadd.xlane.f32.xlu0 %v619
        %v621 = vpop.xlane.xlu0 %620
        %v622 = vrcp.pop %v621
        %v623 = vmul.f32 %v618, %v622
        %s624 = scalar_lea.vmem %s303, 16 [#allocation5]
        %625 = vst.msk [vmem:[%s624] sm:$0xff] %vm323, %v623
        %v626 = vpack.c.bf16 %v623, %v623
        %627 = vrot.lane.b32.xlu0 %v505, 112
        %v628 = vpop.permute.xlu0 %627
        %v630 = vsel %vm323, %v626, 0
        %v633 = vsel %vm386, %v628, 0
        %635 = vmatprep.subr.bf16.mxu0 0
        %636 = vmatpush1.bf16.msra.mxu0 %v633
        %637 = vmatprep.subr.bf16.mxu0 0
        %638 = vmatpush1.bf16.msra.mxu0 0
        %639 = vmatprep.subr.bf16.mxu0 0
        %640 = vmatpush1.bf16.msra.mxu0 0
        %641 = vmatprep.subr.bf16.mxu0 0
        %642 = vmatpush1.bf16.msra.mxu0 0
        %643 = vmatprep.subr.bf16.mxu0 0
        %644 = vmatpush1.bf16.msra.mxu0 0
        %645 = vmatprep.subr.bf16.mxu0 0
        %646 = vmatpush1.bf16.msra.mxu0 0
        %647 = vmatprep.subr.bf16.mxu0 0
        %648 = vmatpush1.bf16.msra.mxu0 0
        %649 = vmatprep.subr.bf16.mxu0 0
        %650 = vmatpush1.bf16.msra.mxu0 0
        %651 = vmatprep.subr.bf16.mxu0 0
        %652 = vmatpush1.bf16.msra.mxu0 0
        %653 = vmatprep.subr.bf16.mxu0 0
        %654 = vmatpush1.bf16.msra.mxu0 0
        %655 = vmatprep.subr.bf16.mxu0 0
        %656 = vmatpush1.bf16.msra.mxu0 0
        %657 = vmatprep.subr.bf16.mxu0 0
        %658 = vmatpush1.bf16.msra.mxu0 0
        %659 = vmatprep.subr.bf16.mxu0 0
        %660 = vmatpush1.bf16.msra.mxu0 0
        %661 = vmatprep.subr.bf16.mxu0 0
        %662 = vmatpush1.bf16.msra.mxu0 0
        %663 = vmatprep.subr.bf16.mxu0 0
        %664 = vmatpush1.bf16.msra.mxu0 0
        %665 = vmatprep.subr.bf16.mxu0 0
        %666 = vmatpush1.bf16.msra.mxu0 0
        %667 = vmatprep.mubr.bf16.mxu0 0
        %668 = vmatmul.mubr.bf16.gmra.mrb[0].mxu0 %v630
        %v669 = vpop.f32.mrb[0].mxu0
        %v670 = vadd.f32 0.0, %v669
        %v671 = vpop.f32.mrb[0].mxu0
        %v672 = vpop.f32.mrb[0].mxu0
        %v673 = vpop.f32.mrb[0].mxu0
        %674 = vdwg.mxu0
        %v675 = vpack.c.bf16 %v670, %v670
        %v677 = vunpack.c.l.b16 %v675
        %v678 = vpack.c.b16 %v677, %v677
        %679 = vrot.lane.b32.xlu0 %v678, 16
        %v680 = vpop.permute.xlu0 %679
        %vm682 = vcmask 191616
        %683 = vst.msk [vmem:[#allocation2] sm:$0xf] %vm682, %v680
        %684 = vrot.lane.b32.xlu0 %v435, 104
        %v685 = vpop.permute.xlu0 %684
        %686 = vrot.lane.b32.xlu0 %v440, 104
        %v687 = vpop.permute.xlu0 %686
        %v689 = vsel %vm323, %v685, 0
        %v692 = vsel %vm323, %v687, 0
        %694 = vmatprep.subr.bf16.mxu0 0
        %695 = vmatpush1.bf16.xpose.msra.mxu0 %v692
        %696 = vmatprep.subr.bf16.mxu0 0
        %697 = vmatpush1.bf16.xpose.msra.mxu0 0
        %698 = vmatprep.subr.bf16.mxu0 0
        %699 = vmatpush1.bf16.xpose.msra.mxu0 0
        %700 = vmatprep.subr.bf16.mxu0 0
        %701 = vmatpush1.bf16.xpose.msra.mxu0 0
        %702 = vmatprep.subr.bf16.mxu0 0
        %703 = vmatpush1.bf16.xpose.msra.mxu0 0
        %704 = vmatprep.subr.bf16.mxu0 0
        %705 = vmatpush1.bf16.xpose.msra.mxu0 0
        %706 = vmatprep.subr.bf16.mxu0 0
        %707 = vmatpush1.bf16.xpose.msra.mxu0 0
        %708 = vmatprep.subr.bf16.mxu0 0
        %709 = vmatpush1.bf16.xpose.msra.mxu0 0
        %710 = vmatprep.subr.bf16.mxu0 0
        %711 = vmatpush1.bf16.xpose.msra.mxu0 0
        %712 = vmatprep.subr.bf16.mxu0 0
        %713 = vmatpush1.bf16.xpose.msra.mxu0 0
        %714 = vmatprep.subr.bf16.mxu0 0
        %715 = vmatpush1.bf16.xpose.msra.mxu0 0
        %716 = vmatprep.subr.bf16.mxu0 0
        %717 = vmatpush1.bf16.xpose.msra.mxu0 0
        %718 = vmatprep.subr.bf16.mxu0 0
        %719 = vmatpush1.bf16.xpose.msra.mxu0 0
        %720 = vmatprep.subr.bf16.mxu0 0
        %721 = vmatpush1.bf16.xpose.msra.mxu0 0
        %722 = vmatprep.subr.bf16.mxu0 0
        %723 = vmatpush1.bf16.xpose.msra.mxu0 0
        %724 = vmatprep.subr.bf16.mxu0 0
        %725 = vmatpush1.bf16.xpose.msra.mxu0 0
        %726 = vmatprep.mubr.bf16.mxu0 0
        %727 = vmatmul.mubr.bf16.gmra.mrb[0].mxu0 %v689
        %v728 = vpop.f32.mrb[0].mxu0
        %v729 = vadd.f32 0.0, %v728
        %v730 = vpop.f32.mrb[0].mxu0
        %v731 = vpop.f32.mrb[0].mxu0
        %v732 = vpop.f32.mrb[0].mxu0
        %733 = vdwg.mxu0
        %v734 = vsel %vm323, %v729, -inf
        %735 = vmax.xlane.f32.xlu0 %v734
        %v736 = vpop.xlane.xlu0 %735
        %v737 = vsub.f32 %v729, %v736
        %v738 = vmul.f32 %v737, 1.442695
        %v739 = vpow.pop %v738
        %v740 = vsel %vm323, %v739, 0.0
        %741 = vadd.xlane.f32.xlu0 %v740
        %v742 = vpop.xlane.xlu0 %741
        %v743 = vrcp.pop %v742
        %v744 = vmul.f32 %v739, %v743
        %s745 = scalar_lea.vmem %s303, 24 [#allocation5]
        %746 = vst.msk [vmem:[%s745] sm:$0xff] %vm323, %v744
        %v747 = vpack.c.bf16 %v744, %v744
        %748 = vrot.lane.b32.xlu0 %v505, 104
        %v749 = vpop.permute.xlu0 %748
        %v751 = vsel %vm323, %v747, 0
        %v754 = vsel %vm386, %v749, 0
        %756 = vmatprep.subr.bf16.mxu0 0
        %757 = vmatpush1.bf16.msra.mxu0 %v754
        %758 = vmatprep.subr.bf16.mxu0 0
        %759 = vmatpush1.bf16.msra.mxu0 0
        %760 = vmatprep.subr.bf16.mxu0 0
        %761 = vmatpush1.bf16.msra.mxu0 0
        %762 = vmatprep.subr.bf16.mxu0 0
        %763 = vmatpush1.bf16.msra.mxu0 0
        %764 = vmatprep.subr.bf16.mxu0 0
        %765 = vmatpush1.bf16.msra.mxu0 0
        %766 = vmatprep.subr.bf16.mxu0 0
        %767 = vmatpush1.bf16.msra.mxu0 0
        %768 = vmatprep.subr.bf16.mxu0 0
        %769 = vmatpush1.bf16.msra.mxu0 0
        %770 = vmatprep.subr.bf16.mxu0 0
        %771 = vmatpush1.bf16.msra.mxu0 0
        %772 = vmatprep.subr.bf16.mxu0 0
        %773 = vmatpush1.bf16.msra.mxu0 0
        %774 = vmatprep.subr.bf16.mxu0 0
        %775 = vmatpush1.bf16.msra.mxu0 0
        %776 = vmatprep.subr.bf16.mxu0 0
        %777 = vmatpush1.bf16.msra.mxu0 0
        %778 = vmatprep.subr.bf16.mxu0 0
        %779 = vmatpush1.bf16.msra.mxu0 0
        %780 = vmatprep.subr.bf16.mxu0 0
        %781 = vmatpush1.bf16.msra.mxu0 0
        %782 = vmatprep.subr.bf16.mxu0 0
        %783 = vmatpush1.bf16.msra.mxu0 0
        %784 = vmatprep.subr.bf16.mxu0 0
        %785 = vmatpush1.bf16.msra.mxu0 0
        %786 = vmatprep.subr.bf16.mxu0 0
        %787 = vmatpush1.bf16.msra.mxu0 0
        %788 = vmatprep.mubr.bf16.mxu0 0
        %789 = vmatmul.mubr.bf16.gmra.mrb[0].mxu0 %v751
        %v790 = vpop.f32.mrb[0].mxu0
        %v791 = vadd.f32 0.0, %v790
        %v792 = vpop.f32.mrb[0].mxu0
        %v793 = vpop.f32.mrb[0].mxu0
        %v794 = vpop.f32.mrb[0].mxu0
        %795 = vdwg.mxu0
        %v796 = vpack.c.bf16 %v791, %v791
        %v798 = vunpack.c.l.b16 %v796
        %v799 = vpack.c.b16 %v798, %v798
        %800 = vrot.lane.b32.xlu0 %v799, 24
        %v801 = vpop.permute.xlu0 %800
        %vm803 = vcmask 257216
        %804 = vst.msk [vmem:[#allocation2] sm:$0xf] %vm803, %v801
        %v805 = vld [vmem:[#allocation2] sm:$0xf]
        %v806 = vld [vmem:[%s3] sm:$0xf]
        %v807 = vld [vmem:[%s3 + $0x4] sm:$0xf]
        %v808 = vld [vmem:[%s3 + $0x8] sm:$0xf]
        %v809 = vld [vmem:[%s3 + $0xc] sm:$0xf]
        %v810 = vld [vmem:[%s4] sm:$0x1]
        %v812 = vlaneseq
        %v813 = vshrl.u32 %v812, 7
        %v814 = vsub.s32 0, %v813
        %v815 = vrot.slane %v810, %v814
        %v821 = vunpack.c.l.b16 %v806
        %v822 = vunpack.c.l.b16 %v807
        %v823 = vunpack.c.l.b16 %v808
        %v824 = vunpack.c.l.b16 %v809
        %v825 = vpack.c.b16 %v822, %v821
        %v826 = vpack.c.b16 %v824, %v823
        %vm829 = vcmask 261120
        %v831 = vsel %vm829, %v805, 0
        %833 = vmatprep.subr.bf16.mxu0 0
        %834 = vmatpush1.bf16.msra.mxu0 %v825
        %835 = vmatprep.subr.bf16.mxu0 0
        %836 = vmatpush1.bf16.msra.mxu0 %v826
        %837 = vmatprep.subr.bf16.mxu0 0
        %838 = vmatpush1.bf16.msra.mxu0 0
        %839 = vmatprep.subr.bf16.mxu0 0
        %840 = vmatpush1.bf16.msra.mxu0 0
        %841 = vmatprep.subr.bf16.mxu0 0
        %842 = vmatpush1.bf16.msra.mxu0 0
        %843 = vmatprep.subr.bf16.mxu0 0
        %844 = vmatpush1.bf16.msra.mxu0 0
        %845 = vmatprep.subr.bf16.mxu0 0
        %846 = vmatpush1.bf16.msra.mxu0 0
        %847 = vmatprep.subr.bf16.mxu0 0
        %848 = vmatpush1.bf16.msra.mxu0 0
        %849 = vmatprep.subr.bf16.mxu0 0
        %850 = vmatpush1.bf16.msra.mxu0 0
        %851 = vmatprep.subr.bf16.mxu0 0
        %852 = vmatpush1.bf16.msra.mxu0 0
        %853 = vmatprep.subr.bf16.mxu0 0
        %854 = vmatpush1.bf16.msra.mxu0 0
        %855 = vmatprep.subr.bf16.mxu0 0
        %856 = vmatpush1.bf16.msra.mxu0 0
        %857 = vmatprep.subr.bf16.mxu0 0
        %858 = vmatpush1.bf16.msra.mxu0 0
        %859 = vmatprep.subr.bf16.mxu0 0
        %860 = vmatpush1.bf16.msra.mxu0 0
        %861 = vmatprep.subr.bf16.mxu0 0
        %862 = vmatpush1.bf16.msra.mxu0 0
        %863 = vmatprep.subr.bf16.mxu0 0
        %864 = vmatpush1.bf16.msra.mxu0 0
        %865 = vmatprep.mubr.bf16.mxu0 0
        %866 = vmatmul.mubr.bf16.gmra.mrb[0].mxu0 %v831
        %v867 = vpop.f32.mrb[0].mxu0
        %v868 = vadd.f32 %v815, %v867
        %v869 = vpop.f32.mrb[0].mxu0
        %v870 = vpop.f32.mrb[0].mxu0
        %v871 = vpop.f32.mrb[0].mxu0
        %872 = vdwg.mxu0
        %873 = vst.msk [vmem:[%s296] sm:$0xff] %vm829, %v868
        %s874 = sand.u32 %s168, 1
        %s875 = scalar_lea.sflag [#allocation4], %s874
        %s876 = sand.u32 %s168, 1
        %s877 = smul.addr %s876, 8
        %s878 = scalar_lea.vmem [#allocation3], %s877
        %s879 = sand.u32 %s196, 1
        %s880 = scalar_lea.sflag [#allocation6], %s879
        %s881 = sand.u32 %s196, 1
        %s882 = smul.addr %s881, 32
        %s883 = scalar_lea.vmem [#allocation5], %s882
        // Predicated region
        $region41: #{multi_head_attention.3} parent=39 // pred_check
          %p884 = pneg %p178
        $region42: #{multi_head_attention.3} parent=39 // pred_check_branch
          %886 = sbr.rel (%p884) target = $region44
        $region43: #{multi_head_attention.3} parent=39 // pred_region
          %s888 = ssub.s32 128, 128
          %889 = vsyncadd %s875, %s888
          %s890 = sadd.s32 %s29, %s28
          %s891 = smul.addr %s890, 128
          %s892 = scalar_lea.hbm %s5, %s891
          %s894 = sshll.u32 %s878, 4
          %s895 = int_to_ptr.vmem [resolvable:$true] %s894
          %897 = dma.vmem_to_hbm [thread:$0]  %s895, 128, %s892, %s875
        $region44: #{multi_head_attention.3} parent=39 // pred_fallthru
          _
        // Predicated region
        $region45: #{multi_head_attention.3} parent=39 // pred_check
          %p898 = pneg %p206
        $region46: #{multi_head_attention.3} parent=39 // pred_check_branch
          %900 = sbr.rel (%p898) target = $region48
        $region47: #{multi_head_attention.3} parent=39 // pred_region
          %s902 = ssub.s32 512, 512
          %903 = vsyncadd %s880, %s902
          %s904 = smul.addr %s28, 4
          %s905 = sadd.s32 %s29, %s904
          %s906 = smul.addr %s905, 128
          %s907 = scalar_lea.hbm %s6, %s906
          %s908 = sshll.u32 %s883, 4
          %s909 = int_to_ptr.vmem [resolvable:$true] %s908
          %914 = dma.vmem_to_hbm [thread:$0]  %s909, 512, %s907, %s880, 128, 128, 8
        $region48: #{multi_head_attention.3} parent=39 // pred_fallthru
          _
      $region40: #{multi_head_attention.3} parent=5 // pred_fallthru
        _
      %p915 = scmp.le.s32.totalorder 2, %s19
      // Predicated region
      $region49: #{multi_head_attention.3} parent=5 // pred_check
        %p916 = pneg %p915
      $region50: #{multi_head_attention.3} parent=5 // pred_check_branch
        %918 = sbr.rel (%p916) target = $region52
      $region51: #{multi_head_attention.3} parent=5 // pred_region
        %s919 = ssub.s32 %s19, 2
        // Predicated region
        $region53: #{multi_head_attention.3} parent=51 // pred_check
          %p920 = pneg %p184
        $region54: #{multi_head_attention.3} parent=51 // pred_check_branch
          %922 = sbr.rel (%p920) target = $region56
        $region55: #{multi_head_attention.3} parent=51 // pred_region
          %s923 = sand.u32 %s169, 1
          %s924 = scalar_lea.sflag [#allocation4], %s923
          %s925 = sand.u32 %s169, 1
          %s926 = smul.addr %s925, 8
          %s927 = scalar_lea.vmem [#allocation3], %s926
          %928 = dma.done %s924, 128
        $region56: #{multi_head_attention.3} parent=51 // pred_fallthru
          _
        // Predicated region
        $region57: #{multi_head_attention.3} parent=51 // pred_check
          %p929 = pneg %p212
        $region58: #{multi_head_attention.3} parent=51 // pred_check_branch
          %931 = sbr.rel (%p929) target = $region60
        $region59: #{multi_head_attention.3} parent=51 // pred_region
          %s932 = sand.u32 %s197, 1
          %s933 = scalar_lea.sflag [#allocation6], %s932
          %s934 = sand.u32 %s197, 1
          %s935 = smul.addr %s934, 32
          %s936 = scalar_lea.vmem [#allocation5], %s935
          %937 = dma.done %s933, 512
        $region60: #{multi_head_attention.3} parent=51 // pred_fallthru
          _
      $region52: #{multi_head_attention.3} parent=5 // pred_fallthru
        _
    $region6: #{multi_head_attention.3} parent=1 // loop_footer
      %s23 = sadd.s32 1, %s19
    $region7: #{multi_head_attention.3} parent=1 // loop_footer_branch
      %18 = sbr.rel target = $region3
    $region8: #{multi_head_attention.3} parent=1 // loop_exit
      _
    %938 = vsyncpa [#allocation4], 1
    %s939 = scalar_lea.sflag [#allocation4], 1
    %940 = vsyncpa %s939, 1
    %941 = vsyncpa [#allocation6], 1
    %s942 = scalar_lea.sflag [#allocation6], 1
    %943 = vsyncpa %s942, 1

</llo_original>
